<compile_context>
chip_gen: v6e
topology: v6e:2x2x1
jax: 0.10.0
libtpu: 0.0.40
codegen_flags: <defaults>
</compile_context>

<pallas_src>
import math

import jax
import jax.numpy as jnp
from jax.experimental import pallas as pl
from jax.experimental.pallas import tpu as pltpu

NUM_HEADS = 4  # fixed by the module: MultiHeadSelfAttention(4, EmbSize // 4, ...)


def _attention_kernel(q_ref, k_ref, v_ref, scores_ref, ctx_ref):
    """One (batch, q-tile) step of multi-head self-attention.

    q_ref:      (1, TQ, E)     bf16  (1/sqrt(d) already folded into the projection)
    k_ref:      (1, S,  E)     bf16  (resident across this batch element's q-tiles)
    v_ref:      (1, S,  E)     bf16
    scores_ref: (1, H, TQ, S)  bf16  softmax probabilities (module output)
    ctx_ref:    (1, TQ, E)     bf16  lane-dense context, heads concatenated
    """
    H = scores_ref.shape[1]
    E = q_ref.shape[2]
    d = E // H

    q = q_ref[0]   # (TQ, E)
    k = k_ref[0]   # (S,  E)
    v = v_ref[0]   # (S,  E)

    # Split the lane-dense E axis into a leading head-batch axis: (H, *, d).
    qh = jnp.stack([q[:, h * d:(h + 1) * d] for h in range(H)], axis=0)
    kh = jnp.stack([k[:, h * d:(h + 1) * d] for h in range(H)], axis=0)
    vh = jnp.stack([v[:, h * d:(h + 1) * d] for h in range(H)], axis=0)

    # Head-batched QK^T: bf16 MXU inputs, f32 accumulation -> (H, TQ, S).
    s = jnp.einsum("hqd,hkd->hqk", qh, kh, preferred_element_type=jnp.float32)

    # Numerically stable softmax over keys (f32). Exact reciprocal: the scores are
    # a module output and should sum to ~1 per row.
    m = jnp.max(s, axis=-1, keepdims=True)
    p = jnp.exp(s - m)
    l = jnp.sum(p, axis=-1, keepdims=True)
    probs = (p * pl.reciprocal(l, approx=False)).astype(jnp.bfloat16)

    # Required module output, stored half-width (halves the dominant HBM stream).
    scores_ref[0] = probs

    # Head-batched P@V: bf16 MXU inputs, f32 accumulation -> (H, TQ, d).
    ctx = jnp.einsum("hqk,hkd->hqd", probs, vh, preferred_element_type=jnp.float32)

    # One lane-dense (TQ, E) bf16 store (E a multiple of 128), heads along lanes.
    ctx_ref[0] = jnp.concatenate([ctx[h] for h in range(H)], axis=-1).astype(jnp.bfloat16)


def _vmem_capacity_bytes():
    # Generation-aware VMEM capacity (v5e/v6e: 128 MiB; v7x: 64 MiB per TensorCore).
    try:
        cap = getattr(pltpu.get_tpu_info(), "vmem_capacity_bytes", None)
        if cap:
            return int(cap)
    except Exception:
        pass
    return 64 * 1024 * 1024  # conservative fallback (v7x-sized)


def _pick_q_tile(batch, seq_len, num_heads, emb, vmem_budget_bytes):
    """Largest q-tile whose per-step working set fits the VMEM budget."""
    bpe = 2  # bf16 in and out of the kernel
    kv_bytes = 2 * 2 * seq_len * emb * bpe           # K + V blocks, double-buffered

    def step_bytes(tq):
        q_b = 2 * tq * emb * bpe
        scores_b = 2 * num_heads * tq * seq_len * bpe  # the big one at large S
        ctx_b = 2 * tq * emb * bpe
        return kv_bytes + q_b + scores_b + ctx_b

    # TODO(synk): masked/padded q-tiles for seq_len not a multiple of 128 — the
    # fallback below uses a full-sequence tile in that case.
    tq = seq_len
    for cand in (512, 256, 128, 64, 32, 16, 8):
        if seq_len % cand == 0 and step_bytes(cand) <= vmem_budget_bytes:
            tq = cand
            break
    # v7x has 2 TensorCores: keep at least 2 parallel grid units when possible.
    while batch * (seq_len // tq) < 2 and tq >= 16 and seq_len % (tq // 2) == 0:
        tq //= 2
    return tq


def multi_head_self_attention(x, wq, bq, wk, bk, wv, bv, wo, bo, num_heads=NUM_HEADS):
    B, S, E = x.shape
    assert E % num_heads == 0 and E % 128 == 0, "EmbSize must be a multiple of 128"
    d = E // num_heads

    # Fold the 1/sqrt(head_dim) attention scale into the Q projection (O(E^2), free
    # relative to the projection matmul); the kernel then does no per-step scaling.
    scale = 1.0 / math.sqrt(d)
    # Q/K/V projections are plain dense matmuls -> XLA.  Outputs stay lane-dense
    # (B, S, E); no head transpose in the wrapper (heads are split in-kernel).
    q = (x @ (wq * scale) + bq * scale).astype(jnp.bfloat16)
    k = (x @ wk + bk).astype(jnp.bfloat16)
    v = (x @ wv + bv).astype(jnp.bfloat16)

    vmem_cap = _vmem_capacity_bytes()
    vmem_limit = min(int(vmem_cap * 0.85), 112 * 1024 * 1024)
    tq = _pick_q_tile(B, S, num_heads, E, int(vmem_limit * 0.9))

    grid = (B, S // tq)
    scores, ctx = pl.pallas_call(
        _attention_kernel,
        grid=grid,
        in_specs=[
            # Q: one lane-dense (TQ, E) tile per step.
            pl.BlockSpec((1, tq, E), lambda b, qi: (b, qi, 0)),
            # K/V: full per-batch-element sequence, resident across its q-tiles.
            pl.BlockSpec((1, S, E), lambda b, qi: (b, 0, 0)),
            pl.BlockSpec((1, S, E), lambda b, qi: (b, 0, 0)),
        ],
        out_specs=[
            pl.BlockSpec((1, num_heads, tq, S), lambda b, qi: (b, 0, qi, 0)),
            pl.BlockSpec((1, tq, E), lambda b, qi: (b, qi, 0)),
        ],
        out_shape=[
            jax.ShapeDtypeStruct((B, num_heads, S, S), jnp.bfloat16),
            jax.ShapeDtypeStruct((B, S, E), jnp.bfloat16),
        ],
        compiler_params=pltpu.CompilerParams(
            dimension_semantics=("parallel", "parallel"),
            vmem_limit_bytes=vmem_limit,
        ),
    )(q, k, v)

    # TODO(synk): attention dropout (AttentionDropout) omitted — eval/inference
    # semantics (identity on the scores).
    # Output projection as a bf16 MXU matmul with f32 accumulation (XLA).
    attn_x = jnp.dot(ctx, wo.astype(jnp.bfloat16),
                     preferred_element_type=jnp.float32) + bo
    return scores, attn_x


def encoder_forward(params, tokens):
    # Embedding lookup kept in plain JAX (review-sanctioned glue).
    x = jnp.take(params["embedding"], tokens, axis=0)          # (B, S, E)
    return multi_head_self_attention(
        x, params["wq"], params["bq"], params["wk"], params["bk"],
        params["wv"], params["bv"], params["wo"], params["bo"])


def encoder_reference(params, tokens, num_heads=NUM_HEADS):
    """Pure-JAX f32 reference for a sanity check."""
    x = jnp.take(params["embedding"], tokens, axis=0)
    B, S, E = x.shape
    d = E // num_heads

    def split_heads(t):
        return t.reshape(B, S, num_heads, d).transpose(0, 2, 1, 3)

    q = split_heads(x @ params["wq"] + params["bq"])
    k = split_heads(x @ params["wk"] + params["bk"])
    v = split_heads(x @ params["wv"] + params["bv"])
    s = jnp.einsum("bhqd,bhkd->bhqk", q, k) / math.sqrt(d)
    p = jax.nn.softmax(s, axis=-1)
    ctx = jnp.einsum("bhqk,bhkd->bhqd", p, v)
    ctx = ctx.transpose(0, 2, 1, 3).reshape(B, S, E)
    return p, ctx @ params["wo"] + params["bo"]


if __name__ == "__main__":
    node_num, EmbSize = 64, 128   # EmbSize multiple of 128 -> lane-dense tiles
    B, S = 2, 128

    key = jax.random.PRNGKey(0)
    ks = jax.random.split(key, 6)
    xavier = 1.0 / math.sqrt(EmbSize)
    params = {
        "embedding": jax.random.normal(ks[0], (node_num, EmbSize), jnp.float32) * 0.5,
        "wq": jax.random.normal(ks[1], (EmbSize, EmbSize), jnp.float32) * xavier,
        "bq": jnp.zeros((EmbSize,), jnp.float32),
        "wk": jax.random.normal(ks[2], (EmbSize, EmbSize), jnp.float32) * xavier,
        "bk": jnp.zeros((EmbSize,), jnp.float32),
        "wv": jax.random.normal(ks[3], (EmbSize, EmbSize), jnp.float32) * xavier,
        "bv": jnp.zeros((EmbSize,), jnp.float32),
        "wo": jax.random.normal(ks[4], (EmbSize, EmbSize), jnp.float32) * xavier,
        "bo": jnp.zeros((EmbSize,), jnp.float32),
    }
    tokens = jax.random.randint(ks[5], (B, S), 0, node_num, dtype=jnp.int32)

    scores, attn_x = jax.jit(encoder_forward)(params, tokens)
    jax.block_until_ready((scores, attn_x))

    # Correctness check against the pure-JAX f32 reference.  The kernel feeds the
    # MXU bf16 and writes bf16 scores/context (per perf review), so tolerances are
    # set accordingly; values match the f32 module within bf16 precision.
    ref_scores, ref_x = encoder_reference(params, tokens)
    score_err = float(jnp.max(jnp.abs(scores.astype(jnp.float32) - ref_scores)))
    x_err = float(jnp.max(jnp.abs(attn_x.astype(jnp.float32) - ref_x)))
    assert score_err < 5e-2, f"attention_score mismatch: max abs err {score_err}"
    assert x_err < 5e-2, f"attention_x mismatch: max abs err {x_err}"

    print("KERNEL_OK")
</pallas_src>

<mosaic_0001>
module attributes {stable_mosaic.version = 11 : i64} {
  func.func @_attention_kernel(%arg0: i32, %arg1: i32, %arg2: memref<1x128x128xbf16, #tpu.memory_space<vmem>>, %arg3: memref<1x128x128xbf16, #tpu.memory_space<vmem>>, %arg4: memref<1x128x128xbf16, #tpu.memory_space<vmem>>, %arg5: memref<1x4x128x128xbf16, #tpu.memory_space<vmem>>, %arg6: memref<1x128x128xbf16, #tpu.memory_space<vmem>>) attributes {dimension_semantics = [#tpu.dimension_semantics<parallel>, #tpu.dimension_semantics<parallel>], iteration_bounds = array<i64: 2, 1>, scalar_prefetch = 0 : i64, scratch_operands = 0 : i64, tpu.core_type = #tpu.core_type<tc>, window_params = [{transform_indices = @transform_0, window_bounds = array<i64: 1, 128, 128>}, {transform_indices = @transform_1, window_bounds = array<i64: 1, 128, 128>}, {transform_indices = @transform_2, window_bounds = array<i64: 1, 128, 128>}, {transform_indices = @transform_3, window_bounds = array<i64: 1, 4, 128, 128>}, {transform_indices = @transform_4, window_bounds = array<i64: 1, 128, 128>}]} {
    %c0 = arith.constant 0 : index
    %c0_0 = arith.constant 0 : index
    %c0_1 = arith.constant 0 : index
    %0 = vector.load %arg2[%c0, %c0_0, %c0_1] : memref<1x128x128xbf16, #tpu.memory_space<vmem>>, vector<1x128x128xbf16>
    %1 = vector.shape_cast %0 : vector<1x128x128xbf16> to vector<128x128xbf16>
    %c0_2 = arith.constant 0 : index
    %c0_3 = arith.constant 0 : index
    %c0_4 = arith.constant 0 : index
    %2 = vector.load %arg3[%c0_2, %c0_3, %c0_4] : memref<1x128x128xbf16, #tpu.memory_space<vmem>>, vector<1x128x128xbf16>
    %3 = vector.shape_cast %2 : vector<1x128x128xbf16> to vector<128x128xbf16>
    %c0_5 = arith.constant 0 : index
    %c0_6 = arith.constant 0 : index
    %c0_7 = arith.constant 0 : index
    %4 = vector.load %arg4[%c0_5, %c0_6, %c0_7] : memref<1x128x128xbf16, #tpu.memory_space<vmem>>, vector<1x128x128xbf16>
    %5 = vector.shape_cast %4 : vector<1x128x128xbf16> to vector<128x128xbf16>
    %6 = vector.extract_strided_slice %1 {offsets = [0, 0], sizes = [128, 32], strides = [1, 1]} : vector<128x128xbf16> to vector<128x32xbf16>
    %7 = vector.extract_strided_slice %1 {offsets = [0, 32], sizes = [128, 32], strides = [1, 1]} : vector<128x128xbf16> to vector<128x32xbf16>
    %8 = vector.extract_strided_slice %1 {offsets = [0, 64], sizes = [128, 32], strides = [1, 1]} : vector<128x128xbf16> to vector<128x32xbf16>
    %9 = vector.extract_strided_slice %1 {offsets = [0, 96], sizes = [128, 32], strides = [1, 1]} : vector<128x128xbf16> to vector<128x32xbf16>
    %10 = vector.shape_cast %6 : vector<128x32xbf16> to vector<1x128x32xbf16>
    %11 = vector.shape_cast %7 : vector<128x32xbf16> to vector<1x128x32xbf16>
    %12 = vector.shape_cast %8 : vector<128x32xbf16> to vector<1x128x32xbf16>
    %13 = vector.shape_cast %9 : vector<128x32xbf16> to vector<1x128x32xbf16>
    %14 = tpu.concatenate %10, %11, %12, %13 in 0 : vector<1x128x32xbf16>, vector<1x128x32xbf16>, vector<1x128x32xbf16>, vector<1x128x32xbf16> -> vector<4x128x32xbf16>
    %15 = vector.extract_strided_slice %3 {offsets = [0, 0], sizes = [128, 32], strides = [1, 1]} : vector<128x128xbf16> to vector<128x32xbf16>
    %16 = vector.extract_strided_slice %3 {offsets = [0, 32], sizes = [128, 32], strides = [1, 1]} : vector<128x128xbf16> to vector<128x32xbf16>
    %17 = vector.extract_strided_slice %3 {offsets = [0, 64], sizes = [128, 32], strides = [1, 1]} : vector<128x128xbf16> to vector<128x32xbf16>
    %18 = vector.extract_strided_slice %3 {offsets = [0, 96], sizes = [128, 32], strides = [1, 1]} : vector<128x128xbf16> to vector<128x32xbf16>
    %19 = vector.shape_cast %15 : vector<128x32xbf16> to vector<1x128x32xbf16>
    %20 = vector.shape_cast %16 : vector<128x32xbf16> to vector<1x128x32xbf16>
    %21 = vector.shape_cast %17 : vector<128x32xbf16> to vector<1x128x32xbf16>
    %22 = vector.shape_cast %18 : vector<128x32xbf16> to vector<1x128x32xbf16>
    %23 = tpu.concatenate %19, %20, %21, %22 in 0 : vector<1x128x32xbf16>, vector<1x128x32xbf16>, vector<1x128x32xbf16>, vector<1x128x32xbf16> -> vector<4x128x32xbf16>
    %24 = vector.extract_strided_slice %5 {offsets = [0, 0], sizes = [128, 32], strides = [1, 1]} : vector<128x128xbf16> to vector<128x32xbf16>
    %25 = vector.extract_strided_slice %5 {offsets = [0, 32], sizes = [128, 32], strides = [1, 1]} : vector<128x128xbf16> to vector<128x32xbf16>
    %26 = vector.extract_strided_slice %5 {offsets = [0, 64], sizes = [128, 32], strides = [1, 1]} : vector<128x128xbf16> to vector<128x32xbf16>
    %27 = vector.extract_strided_slice %5 {offsets = [0, 96], sizes = [128, 32], strides = [1, 1]} : vector<128x128xbf16> to vector<128x32xbf16>
    %28 = vector.shape_cast %24 : vector<128x32xbf16> to vector<1x128x32xbf16>
    %29 = vector.shape_cast %25 : vector<128x32xbf16> to vector<1x128x32xbf16>
    %30 = vector.shape_cast %26 : vector<128x32xbf16> to vector<1x128x32xbf16>
    %31 = vector.shape_cast %27 : vector<128x32xbf16> to vector<1x128x32xbf16>
    %32 = tpu.concatenate %28, %29, %30, %31 in 0 : vector<1x128x32xbf16>, vector<1x128x32xbf16>, vector<1x128x32xbf16>, vector<1x128x32xbf16> -> vector<4x128x32xbf16>
    "tpu.trace_start"() <{level = 10 : i32, message = "hqd,hkd->hqk"}> : () -> ()
    %cst = arith.constant dense<0.000000e+00> : vector<4x128x128xf32>
    %33 = tpu.matmul %14, %23, %cst {dimension_numbers = #tpu.dot_dimension_numbers<[2], [2], [1], [1], [0, 0, 0, 1, 1, 1], [0], [0]>} : vector<4x128x32xbf16>, vector<4x128x32xbf16>, vector<4x128x128xf32> -> vector<4x128x128xf32>
    "tpu.trace_stop"() : () -> ()
    %cst_8 = arith.constant dense<0xFF800000> : vector<4x128xf32>
    %34 = vector.multi_reduction <maximumf>, %33, %cst_8 [2] : vector<4x128x128xf32> to vector<4x128xf32>
    %35 = vector.shape_cast %34 : vector<4x128xf32> to vector<4x128x1xf32>
    %36 = vector.broadcast %35 : vector<4x128x1xf32> to vector<4x128x128xf32>
    %37 = arith.subf %33, %36 : vector<4x128x128xf32>
    %38 = math.exp %37 : vector<4x128x128xf32>
    %cst_9 = arith.constant dense<0.000000e+00> : vector<4x128xf32>
    %39 = vector.multi_reduction <add>, %38, %cst_9 [2] : vector<4x128x128xf32> to vector<4x128xf32>
    %40 = vector.shape_cast %39 : vector<4x128xf32> to vector<4x128x1xf32>
    %41 = tpu.reciprocal %40 : vector<4x128x1xf32> -> vector<4x128x1xf32>
    %42 = vector.broadcast %41 : vector<4x128x1xf32> to vector<4x128x128xf32>
    %43 = arith.mulf %38, %42 : vector<4x128x128xf32>
    %44 = arith.truncf %43 : vector<4x128x128xf32> to vector<4x128x128xbf16>
    %c0_10 = arith.constant 0 : index
    %c0_11 = arith.constant 0 : index
    %c0_12 = arith.constant 0 : index
    %c0_13 = arith.constant 0 : index
    %45 = vector.load %arg5[%c0_10, %c0_11, %c0_12, %c0_13] : memref<1x4x128x128xbf16, #tpu.memory_space<vmem>>, vector<1x4x128x128xbf16>
    %46 = vector.shape_cast %45 : vector<1x4x128x128xbf16> to vector<4x128x128xbf16>
    %47 = vector.shape_cast %44 : vector<4x128x128xbf16> to vector<1x4x128x128xbf16>
    tpu.vector_store %arg5[%c0_10, %c0_11, %c0_12, %c0_13], %47 {strides = array<i32>} : memref<1x4x128x128xbf16, #tpu.memory_space<vmem>>, vector<1x4x128x128xbf16>,
    "tpu.trace_start"() <{level = 10 : i32, message = "hqk,hkd->hqd"}> : () -> ()
    %cst_14 = arith.constant dense<0.000000e+00> : vector<4x128x32xf32>
    %48 = tpu.matmul %44, %32, %cst_14 {dimension_numbers = #tpu.dot_dimension_numbers<[2], [1], [1], [2], [0, 0, 0, 1, 1, 2], [0], [0]>} : vector<4x128x128xbf16>, vector<4x128x32xbf16>, vector<4x128x32xf32> -> vector<4x128x32xf32>
    "tpu.trace_stop"() : () -> ()
    %49 = vector.extract_strided_slice %48 {offsets = [0, 0, 0], sizes = [1, 128, 32], strides = [1, 1, 1]} : vector<4x128x32xf32> to vector<1x128x32xf32>
    %50 = vector.shape_cast %49 : vector<1x128x32xf32> to vector<128x32xf32>
    %51 = vector.extract_strided_slice %48 {offsets = [1, 0, 0], sizes = [1, 128, 32], strides = [1, 1, 1]} : vector<4x128x32xf32> to vector<1x128x32xf32>
    %52 = vector.shape_cast %51 : vector<1x128x32xf32> to vector<128x32xf32>
    %53 = vector.extract_strided_slice %48 {offsets = [2, 0, 0], sizes = [1, 128, 32], strides = [1, 1, 1]} : vector<4x128x32xf32> to vector<1x128x32xf32>
    %54 = vector.shape_cast %53 : vector<1x128x32xf32> to vector<128x32xf32>
    %55 = vector.extract_strided_slice %48 {offsets = [3, 0, 0], sizes = [1, 128, 32], strides = [1, 1, 1]} : vector<4x128x32xf32> to vector<1x128x32xf32>
    %56 = vector.shape_cast %55 : vector<1x128x32xf32> to vector<128x32xf32>
    %57 = tpu.concatenate %50, %52, %54, %56 in 1 : vector<128x32xf32>, vector<128x32xf32>, vector<128x32xf32>, vector<128x32xf32> -> vector<128x128xf32>
    %58 = arith.truncf %57 : vector<128x128xf32> to vector<128x128xbf16>
    %c0_15 = arith.constant 0 : index
    %c0_16 = arith.constant 0 : index
    %c0_17 = arith.constant 0 : index
    %59 = vector.load %arg6[%c0_15, %c0_16, %c0_17] : memref<1x128x128xbf16, #tpu.memory_space<vmem>>, vector<1x128x128xbf16>
    %60 = vector.shape_cast %59 : vector<1x128x128xbf16> to vector<128x128xbf16>
    %61 = vector.shape_cast %58 : vector<128x128xbf16> to vector<1x128x128xbf16>
    tpu.vector_store %arg6[%c0_15, %c0_16, %c0_17], %61 {strides = array<i32>} : memref<1x128x128xbf16, #tpu.memory_space<vmem>>, vector<1x128x128xbf16>,
    return
  }
  func.func @transform_0(%arg0: i32, %arg1: i32) -> (i32, i32, i32) {
    %c0_i32 = arith.constant 0 : i32
    %c0_i32_0 = arith.constant 0 : i32
    return %arg0, %arg1, %c0_i32 : i32, i32, i32
  }
  func.func @transform_1(%arg0: i32, %arg1: i32) -> (i32, i32, i32) {
    %c0_i32 = arith.constant 0 : i32
    %c0_i32_0 = arith.constant 0 : i32
    %c0_i32_1 = arith.constant 0 : i32
    return %arg0, %c0_i32, %c0_i32_0 : i32, i32, i32
  }
  func.func @transform_2(%arg0: i32, %arg1: i32) -> (i32, i32, i32) {
    %c0_i32 = arith.constant 0 : i32
    %c0_i32_0 = arith.constant 0 : i32
    %c0_i32_1 = arith.constant 0 : i32
    return %arg0, %c0_i32, %c0_i32_0 : i32, i32, i32
  }
  func.func @transform_3(%arg0: i32, %arg1: i32) -> (i32, i32, i32, i32) {
    %c0_i32 = arith.constant 0 : i32
    %c0_i32_0 = arith.constant 0 : i32
    %c0_i32_1 = arith.constant 0 : i32
    return %arg0, %c0_i32, %arg1, %c0_i32_0 : i32, i32, i32, i32
  }
  func.func @transform_4(%arg0: i32, %arg1: i32) -> (i32, i32, i32) {
    %c0_i32 = arith.constant 0 : i32
    %c0_i32_0 = arith.constant 0 : i32
    return %arg0, %arg1, %c0_i32 : i32, i32, i32
  }
}

</mosaic_0001>

<llo_original>
// kernel: encoder_forward.1
$region0: #{encoder_forward.1}
  #allocation0 [shape = 'u32[]', space=smem, size = 0x4, offset = 0x4, fixed_abs, tag = 'smem constant byte address 0x4 - core index']
  #allocation1 [shape = 'u32[144,128]{1,0:T(1,128)}', space=vmem, size = 0x12000, scoped, tag = 'internal scratch']
  %s0 = inlined_call_operand.vmem [shape: bf16[2,128,128], index: 0, kind: input, shape index: {}]
  %s1 = inlined_call_operand.vmem [shape: bf16[2,128,128], index: 1, kind: input, shape index: {}]
  %s2 = inlined_call_operand.vmem [shape: bf16[2,128,128], index: 2, kind: input, shape index: {}]
  %s3 = inlined_call_operand.hbm [shape: bf16[2,4,128,128], index: 3, kind: output, shape index: {0}]
  %s4 = inlined_call_operand.vmem [shape: bf16[2,128,128], index: 4, kind: output, shape index: {1}]
  %5 = xla_tuple %s3, %s4
  %s6 = sld [smem:[#allocation0]]
  $region53: #{encoder_forward.1} parent=0
    _
  %s8 = ssub.s32 1, %s6
  %s9 = scalar_select 0, %s8, %s6
  $region1: #{encoder_forward.1} parent=0
    #allocation2 [shape = 'u8[262144]{0}', space=vmem, size = 0x40000, scoped, tag = 'output window, operand 0']
    #allocation3 [shape = 's32[2]{0}', space=sflag, size = 0x8, scoped, tag = 'scoped memory for encoder_forward.1']
    %10 = vsyncpa [#allocation3], 0
    %s11 = scalar_lea.sflag [#allocation3], 1
    %12 = vsyncpa %s11, 0
    loop: start=0, step=1, limit=4
    $region2: #{encoder_forward.1} parent=1 // loop_pre_header
      _
    $region3: #{encoder_forward.1} parent=1 // loop_header
      %s14 = sphi 0, %s18
      %p15 = scmp.ge.s32.totalorder %s14, 4
      %s21 = sphi 0, %s33
      %s22 = sphi 0, %s29
      %s23 = sphi 0, %s21
      %s24 = sphi 0, %s22
      %s25 = sphi 0, %s23
      %s26 = sphi 0, %s24
      %s38 = sphi 0, %s40
      %s41 = sphi 0, %s38
      %s42 = sphi 0, %s41
      %s58 = sphi 0, %s42
      %s64 = sphi 0, %s66
      %s67 = sphi 0, %s64
      %s68 = sphi 0, %s67
      %s84 = sphi 0, %s68
      %s90 = sphi 0, %s92
      %s93 = sphi 0, %s90
      %s94 = sphi 0, %s93
      %s110 = sphi 0, %s94
      %s118 = sphi 0, %s120
      %s121 = sphi 0, %s118
      %s122 = sphi 0, %s121
      %s138 = sphi 0, %s122
      %s146 = sphi 0, %s148
      %s149 = sphi 0, %s146
      %s150 = sphi 0, %s149
      %s166 = sphi 0, %s150
    $region4: #{encoder_forward.1} parent=1 // loop_header_branch
      %17 = sbr.rel (%p15) target = $region8
    $region5: #{encoder_forward.1} parent=1 // loop_body
      %s19 = ssub.s32 %s14, 1
      %s20 = ssub.s32 %s14, 2
      %s27 = sadd.s32 1, %s22
      %p28 = scmp.ge.s32.totalorder %s27, 1
      %s29 = scalar_select %p28, 0, %s27
      %s30 = sadd.s32 1, %s21
      %s31 = scalar_select %p28, %s30, %s21
      %p32 = scmp.ge.s32.totalorder %s31, 2
      %s33 = scalar_select %p32, 0, %s31
      %s34 = ssub.s32 %s21, %s33
      %s35 = ssub.s32 %s22, %s29
      %s36 = sor.u32 %s34, %s35
      %p37 = scmp.eq.s32.totalorder %s36, 0
      %s39 = sadd.s32 %s38, 1
      %s40 = scalar_select %p37, %s38, %s39
      %p43 = pneg %p37
      %p44 = scmp.eq.s32.totalorder %s14, 1
      %p45 = por %p43, %p44
      %p46 = scmp.ne.s32.totalorder %s38, %s41
      %p47 = scmp.eq.s32.totalorder %s14, 0
      %p48 = por %p46, %p47
      %p49 = scmp.ne.s32.totalorder %s38, %s41
      %p50 = scmp.eq.s32.totalorder %s19, 1
      %p51 = por %p49, %p50
      %p52 = scmp.ne.s32.totalorder %s41, %s42
      %p53 = scmp.eq.s32.totalorder %s19, 0
      %p54 = por %p52, %p53
      %p55 = scmp.ne.s32.totalorder %s41, %s42
      %p56 = scmp.eq.s32.totalorder %s20, 1
      %p57 = por %p55, %p56
      %p59 = scmp.ne.s32.totalorder %s42, %s58
      %p60 = scmp.eq.s32.totalorder %s20, 0
      %p61 = por %p59, %p60
      %s62 = ssub.s32 %s21, %s33
      %p63 = scmp.eq.s32.totalorder %s62, 0
      %s65 = sadd.s32 %s64, 1
      %s66 = scalar_select %p63, %s64, %s65
      %p69 = pneg %p63
      %p70 = scmp.eq.s32.totalorder %s14, 1
      %p71 = por %p69, %p70
      %p72 = scmp.ne.s32.totalorder %s64, %s67
      %p73 = scmp.eq.s32.totalorder %s14, 0
      %p74 = por %p72, %p73
      %p75 = scmp.ne.s32.totalorder %s64, %s67
      %p76 = scmp.eq.s32.totalorder %s19, 1
      %p77 = por %p75, %p76
      %p78 = scmp.ne.s32.totalorder %s67, %s68
      %p79 = scmp.eq.s32.totalorder %s19, 0
      %p80 = por %p78, %p79
      %p81 = scmp.ne.s32.totalorder %s67, %s68
      %p82 = scmp.eq.s32.totalorder %s20, 1
      %p83 = por %p81, %p82
      %p85 = scmp.ne.s32.totalorder %s68, %s84
      %p86 = scmp.eq.s32.totalorder %s20, 0
      %p87 = por %p85, %p86
      %s88 = ssub.s32 %s21, %s33
      %p89 = scmp.eq.s32.totalorder %s88, 0
      %s91 = sadd.s32 %s90, 1
      %s92 = scalar_select %p89, %s90, %s91
      %p95 = pneg %p89
      %p96 = scmp.eq.s32.totalorder %s14, 1
      %p97 = por %p95, %p96
      %p98 = scmp.ne.s32.totalorder %s90, %s93
      %p99 = scmp.eq.s32.totalorder %s14, 0
      %p100 = por %p98, %p99
      %p101 = scmp.ne.s32.totalorder %s90, %s93
      %p102 = scmp.eq.s32.totalorder %s19, 1
      %p103 = por %p101, %p102
      %p104 = scmp.ne.s32.totalorder %s93, %s94
      %p105 = scmp.eq.s32.totalorder %s19, 0
      %p106 = por %p104, %p105
      %p107 = scmp.ne.s32.totalorder %s93, %s94
      %p108 = scmp.eq.s32.totalorder %s20, 1
      %p109 = por %p107, %p108
      %p111 = scmp.ne.s32.totalorder %s94, %s110
      %p112 = scmp.eq.s32.totalorder %s20, 0
      %p113 = por %p111, %p112
      %s114 = ssub.s32 %s21, %s33
      %s115 = ssub.s32 %s22, %s29
      %s116 = sor.u32 %s114, %s115
      %p117 = scmp.eq.s32.totalorder %s116, 0
      %s119 = sadd.s32 %s118, 1
      %s120 = scalar_select %p117, %s118, %s119
      %p123 = pneg %p117
      %p124 = scmp.eq.s32.totalorder %s14, 1
      %p125 = por %p123, %p124
      %p126 = scmp.ne.s32.totalorder %s118, %s121
      %p127 = scmp.eq.s32.totalorder %s14, 0
      %p128 = por %p126, %p127
      %p129 = scmp.ne.s32.totalorder %s118, %s121
      %p130 = scmp.eq.s32.totalorder %s19, 1
      %p131 = por %p129, %p130
      %p132 = scmp.ne.s32.totalorder %s121, %s122
      %p133 = scmp.eq.s32.totalorder %s19, 0
      %p134 = por %p132, %p133
      %p135 = scmp.ne.s32.totalorder %s121, %s122
      %p136 = scmp.eq.s32.totalorder %s20, 1
      %p137 = por %p135, %p136
      %p139 = scmp.ne.s32.totalorder %s122, %s138
      %p140 = scmp.eq.s32.totalorder %s20, 0
      %p141 = por %p139, %p140
      %s142 = ssub.s32 %s21, %s33
      %s143 = ssub.s32 %s22, %s29
      %s144 = sor.u32 %s142, %s143
      %p145 = scmp.eq.s32.totalorder %s144, 0
      %s147 = sadd.s32 %s146, 1
      %s148 = scalar_select %p145, %s146, %s147
      %p151 = pneg %p145
      %p152 = scmp.eq.s32.totalorder %s14, 1
      %p153 = por %p151, %p152
      %p154 = scmp.ne.s32.totalorder %s146, %s149
      %p155 = scmp.eq.s32.totalorder %s14, 0
      %p156 = por %p154, %p155
      %p157 = scmp.ne.s32.totalorder %s146, %s149
      %p158 = scmp.eq.s32.totalorder %s19, 1
      %p159 = por %p157, %p158
      %p160 = scmp.ne.s32.totalorder %s149, %s150
      %p161 = scmp.eq.s32.totalorder %s19, 0
      %p162 = por %p160, %p161
      %p163 = scmp.ne.s32.totalorder %s149, %s150
      %p164 = scmp.eq.s32.totalorder %s20, 1
      %p165 = por %p163, %p164
      %p167 = scmp.ne.s32.totalorder %s150, %s166
      %p168 = scmp.eq.s32.totalorder %s20, 0
      %p169 = por %p167, %p168
      %p170 = scmp.le.s32.totalorder 1, %s14
      %p171 = scmp.lt.s32.totalorder %s14, 3
      %p172 = pnand %p170, %p171
      %p173 = pneg %p172
      // Predicated region
      $region9: #{encoder_forward.1} parent=5 // pred_check
        _
      $region10: #{encoder_forward.1} parent=5 // pred_check_branch
        %175 = sbr.rel (%p172) target = $region12
      $region11: #{encoder_forward.1} parent=5 // pred_region
        %s176 = ssub.s32 %s14, 1
      $region12: #{encoder_forward.1} parent=5 // pred_fallthru
        _
      %p177 = scmp.lt.s32.totalorder %s14, 2
      // Predicated region
      $region13: #{encoder_forward.1} parent=5 // pred_check
        %p178 = pneg %p177
      $region14: #{encoder_forward.1} parent=5 // pred_check_branch
        %180 = sbr.rel (%p178) target = $region16
      $region15: #{encoder_forward.1} parent=5 // pred_region
        // Predicated region
        $region17: #{encoder_forward.1} parent=15 // pred_check
          %p181 = pneg %p48
        $region18: #{encoder_forward.1} parent=15 // pred_check_branch
          %183 = sbr.rel (%p181) target = $region20
        $region19: #{encoder_forward.1} parent=15 // pred_region
          %s184 = smul.u32 16, %s22
          %p185 = scmp.lt.s32.totalorder %s21, 1
          %s186 = scalar_select %p185, %s21, 1
          %p187 = scmp.lt.s32.totalorder %s184, 15
          %s188 = scalar_select %p187, %s184, 15
          %s189 = smul.addr %s186, 16
          %s190 = sadd.s32 %s188, %s189
          %s191 = smul.addr %s190, 4
          %s192 = scalar_lea.vmem %s0, %s191
          %s193 = smul.u32 16, %s22
        $region20: #{encoder_forward.1} parent=15 // pred_fallthru
          _
        // Predicated region
        $region21: #{encoder_forward.1} parent=15 // pred_check
          %p194 = pneg %p74
        $region22: #{encoder_forward.1} parent=15 // pred_check_branch
          %196 = sbr.rel (%p194) target = $region24
        $region23: #{encoder_forward.1} parent=15 // pred_region
          %p197 = scmp.lt.s32.totalorder %s21, 1
          %s198 = scalar_select %p197, %s21, 1
          %s199 = smul.addr %s198, 16
          %s200 = smul.addr %s199, 4
          %s201 = scalar_lea.vmem %s1, %s200
        $region24: #{encoder_forward.1} parent=15 // pred_fallthru
          _
        // Predicated region
        $region25: #{encoder_forward.1} parent=15 // pred_check
          %p202 = pneg %p100
        $region26: #{encoder_forward.1} parent=15 // pred_check_branch
          %204 = sbr.rel (%p202) target = $region28
        $region27: #{encoder_forward.1} parent=15 // pred_region
          %p205 = scmp.lt.s32.totalorder %s21, 1
          %s206 = scalar_select %p205, %s21, 1
          %s207 = smul.addr %s206, 16
          %s208 = smul.addr %s207, 4
          %s209 = scalar_lea.vmem %s2, %s208
        $region28: #{encoder_forward.1} parent=15 // pred_fallthru
          _
      $region16: #{encoder_forward.1} parent=5 // pred_fallthru
        _
      %p210 = scmp.le.s32.totalorder 1, %s14
      %p211 = scmp.lt.s32.totalorder %s14, 3
      %p212 = pnand %p210, %p211
      %p213 = pneg %p212
      // Predicated region
      $region29: #{encoder_forward.1} parent=5 // pred_check
        _
      $region30: #{encoder_forward.1} parent=5 // pred_check_branch
        %215 = sbr.rel (%p212) target = $region32
      $region31: #{encoder_forward.1} parent=5 // pred_region
        %s216 = ssub.s32 %s14, 1
        %s217 = smul.u32 16, %s24
        %p218 = scmp.lt.s32.totalorder %s23, 1
        %s219 = scalar_select %p218, %s23, 1
        %p220 = scmp.lt.s32.totalorder %s217, 15
        %s221 = scalar_select %p220, %s217, 15
        %s222 = smul.addr %s219, 16
        %s223 = sadd.s32 %s221, %s222
        %s224 = smul.addr %s223, 4
        %s225 = scalar_lea.vmem %s0, %s224
        %p226 = pneg %p54
        %p227 = pneg %p51
        %p228 = scmp.lt.s32.totalorder %s23, 1
        %s229 = scalar_select %p228, %s23, 1
        %s230 = smul.addr %s229, 16
        %s231 = smul.addr %s230, 4
        %s232 = scalar_lea.vmem %s1, %s231
        %p233 = pneg %p80
        %p234 = pneg %p77
        %p235 = scmp.lt.s32.totalorder %s23, 1
        %s236 = scalar_select %p235, %s23, 1
        %s237 = smul.addr %s236, 16
        %s238 = smul.addr %s237, 4
        %s239 = scalar_lea.vmem %s2, %s238
        %p240 = pneg %p106
        %p241 = pneg %p103
        %p242 = pneg %p134
        %p243 = pneg %p131
        %s244 = sand.u32 %s121, 1
        %s245 = scalar_lea.sflag [#allocation3], %s244
        %s246 = sand.u32 %s121, 1
        %s247 = smul.addr %s246, 256
        %s248 = scalar_lea.vmem [#allocation2], %s247
        %p249 = pneg %p162
        %p250 = pneg %p159
        %s251 = smul.u32 16, %s24
        %p252 = scmp.lt.s32.totalorder %s23, 1
        %s253 = scalar_select %p252, %s23, 1
        %p254 = scmp.lt.s32.totalorder %s251, 15
        %s255 = scalar_select %p254, %s251, 15
        %s256 = smul.addr %s253, 16
        %s257 = sadd.s32 %s255, %s256
        %s258 = smul.addr %s257, 4
        %s259 = scalar_lea.vmem %s4, %s258
        %s260 = smul.u32 16, %s24
        %p261 = scmp.lt.s32.totalorder %s23, 1
        %s262 = scalar_select %p261, %s23, 1
        %p263 = scmp.lt.s32.totalorder %s260, 15
        %s264 = scalar_select %p263, %s260, 15
        %s265 = smul.addr %s262, 16
        %s266 = sadd.s32 %s264, %s265
        %s267 = smul.addr %s266, 4
        %s268 = scalar_lea.vmem %s0, %s267
        %s269 = smul.u32 16, %s24
        %p270 = scmp.lt.s32.totalorder %s23, 1
        %s271 = scalar_select %p270, %s23, 1
        %s272 = smul.addr %s271, 16
        %s273 = smul.addr %s272, 4
        %s274 = scalar_lea.vmem %s1, %s273
        %p275 = scmp.lt.s32.totalorder %s23, 1
        %s276 = scalar_select %p275, %s23, 1
        %s277 = smul.addr %s276, 16
        %s278 = smul.addr %s277, 4
        %s279 = scalar_lea.vmem %s2, %s278
        %s280 = smul.u32 16, %s24
        %s281 = smul.u32 16, %s24
        %p282 = scmp.lt.s32.totalorder %s23, 1
        %s283 = scalar_select %p282, %s23, 1
        %p284 = scmp.lt.s32.totalorder %s281, 15
        %s285 = scalar_select %p284, %s281, 15
        %s286 = smul.addr %s283, 16
        %s287 = sadd.s32 %s285, %s286
        %s288 = smul.addr %s287, 4
        %s289 = scalar_lea.vmem %s4, %s288
        %s290 = smul.u32 16, %s24
        %v292 = vld [vmem:[%s268] sm:$0xf]
        %v293 = vld [vmem:[%s268 + $0x4] sm:$0xf]
        %v294 = vld [vmem:[%s268 + $0x8] sm:$0xf]
        %v295 = vld [vmem:[%s268 + $0xc] sm:$0xf]
        %v296 = vld [vmem:[%s268 + $0x10] sm:$0xf]
        %v297 = vld [vmem:[%s268 + $0x14] sm:$0xf]
        %v298 = vld [vmem:[%s268 + $0x18] sm:$0xf]
        %v299 = vld [vmem:[%s268 + $0x1c] sm:$0xf]
        %v300 = vld [vmem:[%s268 + $0x20] sm:$0xf]
        %v301 = vld [vmem:[%s268 + $0x24] sm:$0xf]
        %v302 = vld [vmem:[%s268 + $0x28] sm:$0xf]
        %v303 = vld [vmem:[%s268 + $0x2c] sm:$0xf]
        %v304 = vld [vmem:[%s268 + $0x30] sm:$0xf]
        %v305 = vld [vmem:[%s268 + $0x34] sm:$0xf]
        %v306 = vld [vmem:[%s268 + $0x38] sm:$0xf]
        %v307 = vld [vmem:[%s268 + $0x3c] sm:$0xf]
        %v308 = vld [vmem:[%s274] sm:$0xf]
        %v309 = vld [vmem:[%s274 + $0x4] sm:$0xf]
        %v310 = vld [vmem:[%s274 + $0x8] sm:$0xf]
        %v311 = vld [vmem:[%s274 + $0xc] sm:$0xf]
        %v312 = vld [vmem:[%s274 + $0x10] sm:$0xf]
        %v313 = vld [vmem:[%s274 + $0x14] sm:$0xf]
        %v314 = vld [vmem:[%s274 + $0x18] sm:$0xf]
        %v315 = vld [vmem:[%s274 + $0x1c] sm:$0xf]
        %v316 = vld [vmem:[%s274 + $0x20] sm:$0xf]
        %v317 = vld [vmem:[%s274 + $0x24] sm:$0xf]
        %v318 = vld [vmem:[%s274 + $0x28] sm:$0xf]
        %v319 = vld [vmem:[%s274 + $0x2c] sm:$0xf]
        %v320 = vld [vmem:[%s274 + $0x30] sm:$0xf]
        %v321 = vld [vmem:[%s274 + $0x34] sm:$0xf]
        %v322 = vld [vmem:[%s274 + $0x38] sm:$0xf]
        %v323 = vld [vmem:[%s274 + $0x3c] sm:$0xf]
        %v324 = vld [vmem:[%s279] sm:$0xf]
        %v325 = vld [vmem:[%s279 + $0x4] sm:$0xf]
        %v326 = vld [vmem:[%s279 + $0x8] sm:$0xf]
        %v327 = vld [vmem:[%s279 + $0xc] sm:$0xf]
        %v328 = vld [vmem:[%s279 + $0x10] sm:$0xf]
        %v329 = vld [vmem:[%s279 + $0x14] sm:$0xf]
        %v330 = vld [vmem:[%s279 + $0x18] sm:$0xf]
        %v331 = vld [vmem:[%s279 + $0x1c] sm:$0xf]
        %v332 = vld [vmem:[%s279 + $0x20] sm:$0xf]
        %v333 = vld [vmem:[%s279 + $0x24] sm:$0xf]
        %v334 = vld [vmem:[%s279 + $0x28] sm:$0xf]
        %v335 = vld [vmem:[%s279 + $0x2c] sm:$0xf]
        %v336 = vld [vmem:[%s279 + $0x30] sm:$0xf]
        %v337 = vld [vmem:[%s279 + $0x34] sm:$0xf]
        %v338 = vld [vmem:[%s279 + $0x38] sm:$0xf]
        %v339 = vld [vmem:[%s279 + $0x3c] sm:$0xf]
        %356 = vrot.lane.b32.xlu0 %v292, 96
        %v357 = vpop.permute.xlu0 %356
        %358 = vrot.lane.b32.xlu0 %v293, 96
        %v359 = vpop.permute.xlu0 %358
        %360 = vrot.lane.b32.xlu0 %v294, 96
        %v361 = vpop.permute.xlu0 %360
        %362 = vrot.lane.b32.xlu0 %v295, 96
        %v363 = vpop.permute.xlu0 %362
        %364 = vrot.lane.b32.xlu0 %v296, 96
        %v365 = vpop.permute.xlu0 %364
        %366 = vrot.lane.b32.xlu0 %v297, 96
        %v367 = vpop.permute.xlu0 %366
        %368 = vrot.lane.b32.xlu0 %v298, 96
        %v369 = vpop.permute.xlu0 %368
        %370 = vrot.lane.b32.xlu0 %v299, 96
        %v371 = vpop.permute.xlu0 %370
        %372 = vrot.lane.b32.xlu0 %v300, 96
        %v373 = vpop.permute.xlu0 %372
        %374 = vrot.lane.b32.xlu0 %v301, 96
        %v375 = vpop.permute.xlu0 %374
        %376 = vrot.lane.b32.xlu0 %v302, 96
        %v377 = vpop.permute.xlu0 %376
        %378 = vrot.lane.b32.xlu0 %v303, 96
        %v379 = vpop.permute.xlu0 %378
        %380 = vrot.lane.b32.xlu0 %v304, 96
        %v381 = vpop.permute.xlu0 %380
        %382 = vrot.lane.b32.xlu0 %v305, 96
        %v383 = vpop.permute.xlu0 %382
        %384 = vrot.lane.b32.xlu0 %v306, 96
        %v385 = vpop.permute.xlu0 %384
        %386 = vrot.lane.b32.xlu0 %v307, 96
        %v387 = vpop.permute.xlu0 %386
        %388 = vrot.lane.b32.xlu0 %v292, 64
        %v389 = vpop.permute.xlu0 %388
        %390 = vrot.lane.b32.xlu0 %v293, 64
        %v391 = vpop.permute.xlu0 %390
        %392 = vrot.lane.b32.xlu0 %v294, 64
        %v393 = vpop.permute.xlu0 %392
        %394 = vrot.lane.b32.xlu0 %v295, 64
        %v395 = vpop.permute.xlu0 %394
        %396 = vrot.lane.b32.xlu0 %v296, 64
        %v397 = vpop.permute.xlu0 %396
        %398 = vrot.lane.b32.xlu0 %v297, 64
        %v399 = vpop.permute.xlu0 %398
        %400 = vrot.lane.b32.xlu0 %v298, 64
        %v401 = vpop.permute.xlu0 %400
        %402 = vrot.lane.b32.xlu0 %v299, 64
        %v403 = vpop.permute.xlu0 %402
        %404 = vrot.lane.b32.xlu0 %v300, 64
        %v405 = vpop.permute.xlu0 %404
        %406 = vrot.lane.b32.xlu0 %v301, 64
        %v407 = vpop.permute.xlu0 %406
        %408 = vrot.lane.b32.xlu0 %v302, 64
        %v409 = vpop.permute.xlu0 %408
        %410 = vrot.lane.b32.xlu0 %v303, 64
        %v411 = vpop.permute.xlu0 %410
        %412 = vrot.lane.b32.xlu0 %v304, 64
        %v413 = vpop.permute.xlu0 %412
        %414 = vrot.lane.b32.xlu0 %v305, 64
        %v415 = vpop.permute.xlu0 %414
        %416 = vrot.lane.b32.xlu0 %v306, 64
        %v417 = vpop.permute.xlu0 %416
        %418 = vrot.lane.b32.xlu0 %v307, 64
        %v419 = vpop.permute.xlu0 %418
        %420 = vrot.lane.b32.xlu0 %v292, 32
        %v421 = vpop.permute.xlu0 %420
        %422 = vrot.lane.b32.xlu0 %v293, 32
        %v423 = vpop.permute.xlu0 %422
        %424 = vrot.lane.b32.xlu0 %v294, 32
        %v425 = vpop.permute.xlu0 %424
        %426 = vrot.lane.b32.xlu0 %v295, 32
        %v427 = vpop.permute.xlu0 %426
        %428 = vrot.lane.b32.xlu0 %v296, 32
        %v429 = vpop.permute.xlu0 %428
        %430 = vrot.lane.b32.xlu0 %v297, 32
        %v431 = vpop.permute.xlu0 %430
        %432 = vrot.lane.b32.xlu0 %v298, 32
        %v433 = vpop.permute.xlu0 %432
        %434 = vrot.lane.b32.xlu0 %v299, 32
        %v435 = vpop.permute.xlu0 %434
        %436 = vrot.lane.b32.xlu0 %v300, 32
        %v437 = vpop.permute.xlu0 %436
        %438 = vrot.lane.b32.xlu0 %v301, 32
        %v439 = vpop.permute.xlu0 %438
        %440 = vrot.lane.b32.xlu0 %v302, 32
        %v441 = vpop.permute.xlu0 %440
        %442 = vrot.lane.b32.xlu0 %v303, 32
        %v443 = vpop.permute.xlu0 %442
        %444 = vrot.lane.b32.xlu0 %v304, 32
        %v445 = vpop.permute.xlu0 %444
        %446 = vrot.lane.b32.xlu0 %v305, 32
        %v447 = vpop.permute.xlu0 %446
        %448 = vrot.lane.b32.xlu0 %v306, 32
        %v449 = vpop.permute.xlu0 %448
        %450 = vrot.lane.b32.xlu0 %v307, 32
        %v451 = vpop.permute.xlu0 %450
        %468 = vrot.lane.b32.xlu0 %v308, 96
        %v469 = vpop.permute.xlu0 %468
        %470 = vrot.lane.b32.xlu0 %v309, 96
        %v471 = vpop.permute.xlu0 %470
        %472 = vrot.lane.b32.xlu0 %v310, 96
        %v473 = vpop.permute.xlu0 %472
        %474 = vrot.lane.b32.xlu0 %v311, 96
        %v475 = vpop.permute.xlu0 %474
        %476 = vrot.lane.b32.xlu0 %v312, 96
        %v477 = vpop.permute.xlu0 %476
        %478 = vrot.lane.b32.xlu0 %v313, 96
        %v479 = vpop.permute.xlu0 %478
        %480 = vrot.lane.b32.xlu0 %v314, 96
        %v481 = vpop.permute.xlu0 %480
        %482 = vrot.lane.b32.xlu0 %v315, 96
        %v483 = vpop.permute.xlu0 %482
        %484 = vrot.lane.b32.xlu0 %v316, 96
        %v485 = vpop.permute.xlu0 %484
        %486 = vrot.lane.b32.xlu0 %v317, 96
        %v487 = vpop.permute.xlu0 %486
        %488 = vrot.lane.b32.xlu0 %v318, 96
        %v489 = vpop.permute.xlu0 %488
        %490 = vrot.lane.b32.xlu0 %v319, 96
        %v491 = vpop.permute.xlu0 %490
        %492 = vrot.lane.b32.xlu0 %v320, 96
        %v493 = vpop.permute.xlu0 %492
        %494 = vrot.lane.b32.xlu0 %v321, 96
        %v495 = vpop.permute.xlu0 %494
        %496 = vrot.lane.b32.xlu0 %v322, 96
        %v497 = vpop.permute.xlu0 %496
        %498 = vrot.lane.b32.xlu0 %v323, 96
        %v499 = vpop.permute.xlu0 %498
        %500 = vrot.lane.b32.xlu0 %v308, 64
        %v501 = vpop.permute.xlu0 %500
        %502 = vrot.lane.b32.xlu0 %v309, 64
        %v503 = vpop.permute.xlu0 %502
        %504 = vrot.lane.b32.xlu0 %v310, 64
        %v505 = vpop.permute.xlu0 %504
        %506 = vrot.lane.b32.xlu0 %v311, 64
        %v507 = vpop.permute.xlu0 %506
        %508 = vrot.lane.b32.xlu0 %v312, 64
        %v509 = vpop.permute.xlu0 %508
        %510 = vrot.lane.b32.xlu0 %v313, 64
        %v511 = vpop.permute.xlu0 %510
        %512 = vrot.lane.b32.xlu0 %v314, 64
        %v513 = vpop.permute.xlu0 %512
        %514 = vrot.lane.b32.xlu0 %v315, 64
        %v515 = vpop.permute.xlu0 %514
        %516 = vrot.lane.b32.xlu0 %v316, 64
        %v517 = vpop.permute.xlu0 %516
        %518 = vrot.lane.b32.xlu0 %v317, 64
        %v519 = vpop.permute.xlu0 %518
        %520 = vrot.lane.b32.xlu0 %v318, 64
        %v521 = vpop.permute.xlu0 %520
        %522 = vrot.lane.b32.xlu0 %v319, 64
        %v523 = vpop.permute.xlu0 %522
        %524 = vrot.lane.b32.xlu0 %v320, 64
        %v525 = vpop.permute.xlu0 %524
        %526 = vrot.lane.b32.xlu0 %v321, 64
        %v527 = vpop.permute.xlu0 %526
        %528 = vrot.lane.b32.xlu0 %v322, 64
        %v529 = vpop.permute.xlu0 %528
        %530 = vrot.lane.b32.xlu0 %v323, 64
        %v531 = vpop.permute.xlu0 %530
        %532 = vrot.lane.b32.xlu0 %v308, 32
        %v533 = vpop.permute.xlu0 %532
        %534 = vrot.lane.b32.xlu0 %v309, 32
        %v535 = vpop.permute.xlu0 %534
        %536 = vrot.lane.b32.xlu0 %v310, 32
        %v537 = vpop.permute.xlu0 %536
        %538 = vrot.lane.b32.xlu0 %v311, 32
        %v539 = vpop.permute.xlu0 %538
        %540 = vrot.lane.b32.xlu0 %v312, 32
        %v541 = vpop.permute.xlu0 %540
        %542 = vrot.lane.b32.xlu0 %v313, 32
        %v543 = vpop.permute.xlu0 %542
        %544 = vrot.lane.b32.xlu0 %v314, 32
        %v545 = vpop.permute.xlu0 %544
        %546 = vrot.lane.b32.xlu0 %v315, 32
        %v547 = vpop.permute.xlu0 %546
        %548 = vrot.lane.b32.xlu0 %v316, 32
        %v549 = vpop.permute.xlu0 %548
        %550 = vrot.lane.b32.xlu0 %v317, 32
        %v551 = vpop.permute.xlu0 %550
        %552 = vrot.lane.b32.xlu0 %v318, 32
        %v553 = vpop.permute.xlu0 %552
        %554 = vrot.lane.b32.xlu0 %v319, 32
        %v555 = vpop.permute.xlu0 %554
        %556 = vrot.lane.b32.xlu0 %v320, 32
        %v557 = vpop.permute.xlu0 %556
        %558 = vrot.lane.b32.xlu0 %v321, 32
        %v559 = vpop.permute.xlu0 %558
        %560 = vrot.lane.b32.xlu0 %v322, 32
        %v561 = vpop.permute.xlu0 %560
        %562 = vrot.lane.b32.xlu0 %v323, 32
        %v563 = vpop.permute.xlu0 %562
        %580 = vrot.lane.b32.xlu0 %v324, 96
        %v581 = vpop.permute.xlu0 %580
        %582 = vrot.lane.b32.xlu0 %v325, 96
        %v583 = vpop.permute.xlu0 %582
        %584 = vrot.lane.b32.xlu0 %v326, 96
        %v585 = vpop.permute.xlu0 %584
        %586 = vrot.lane.b32.xlu0 %v327, 96
        %v587 = vpop.permute.xlu0 %586
        %588 = vrot.lane.b32.xlu0 %v328, 96
        %v589 = vpop.permute.xlu0 %588
        %590 = vrot.lane.b32.xlu0 %v329, 96
        %v591 = vpop.permute.xlu0 %590
        %592 = vrot.lane.b32.xlu0 %v330, 96
        %v593 = vpop.permute.xlu0 %592
        %594 = vrot.lane.b32.xlu0 %v331, 96
        %v595 = vpop.permute.xlu0 %594
        %596 = vrot.lane.b32.xlu0 %v332, 96
        %v597 = vpop.permute.xlu0 %596
        %598 = vrot.lane.b32.xlu0 %v333, 96
        %v599 = vpop.permute.xlu0 %598
        %600 = vrot.lane.b32.xlu0 %v334, 96
        %v601 = vpop.permute.xlu0 %600
        %602 = vrot.lane.b32.xlu0 %v335, 96
        %v603 = vpop.permute.xlu0 %602
        %604 = vrot.lane.b32.xlu0 %v336, 96
        %v605 = vpop.permute.xlu0 %604
        %606 = vrot.lane.b32.xlu0 %v337, 96
        %v607 = vpop.permute.xlu0 %606
        %608 = vrot.lane.b32.xlu0 %v338, 96
        %v609 = vpop.permute.xlu0 %608
        %610 = vrot.lane.b32.xlu0 %v339, 96
        %v611 = vpop.permute.xlu0 %610
        %612 = vrot.lane.b32.xlu0 %v324, 64
        %v613 = vpop.permute.xlu0 %612
        %614 = vrot.lane.b32.xlu0 %v325, 64
        %v615 = vpop.permute.xlu0 %614
        %616 = vrot.lane.b32.xlu0 %v326, 64
        %v617 = vpop.permute.xlu0 %616
        %618 = vrot.lane.b32.xlu0 %v327, 64
        %v619 = vpop.permute.xlu0 %618
        %620 = vrot.lane.b32.xlu0 %v328, 64
        %v621 = vpop.permute.xlu0 %620
        %622 = vrot.lane.b32.xlu0 %v329, 64
        %v623 = vpop.permute.xlu0 %622
        %624 = vrot.lane.b32.xlu0 %v330, 64
        %v625 = vpop.permute.xlu0 %624
        %626 = vrot.lane.b32.xlu0 %v331, 64
        %v627 = vpop.permute.xlu0 %626
        %628 = vrot.lane.b32.xlu0 %v332, 64
        %v629 = vpop.permute.xlu0 %628
        %630 = vrot.lane.b32.xlu0 %v333, 64
        %v631 = vpop.permute.xlu0 %630
        %632 = vrot.lane.b32.xlu0 %v334, 64
        %v633 = vpop.permute.xlu0 %632
        %634 = vrot.lane.b32.xlu0 %v335, 64
        %v635 = vpop.permute.xlu0 %634
        %636 = vrot.lane.b32.xlu0 %v336, 64
        %v637 = vpop.permute.xlu0 %636
        %638 = vrot.lane.b32.xlu0 %v337, 64
        %v639 = vpop.permute.xlu0 %638
        %640 = vrot.lane.b32.xlu0 %v338, 64
        %v641 = vpop.permute.xlu0 %640
        %642 = vrot.lane.b32.xlu0 %v339, 64
        %v643 = vpop.permute.xlu0 %642
        %644 = vrot.lane.b32.xlu0 %v324, 32
        %v645 = vpop.permute.xlu0 %644
        %646 = vrot.lane.b32.xlu0 %v325, 32
        %v647 = vpop.permute.xlu0 %646
        %648 = vrot.lane.b32.xlu0 %v326, 32
        %v649 = vpop.permute.xlu0 %648
        %650 = vrot.lane.b32.xlu0 %v327, 32
        %v651 = vpop.permute.xlu0 %650
        %652 = vrot.lane.b32.xlu0 %v328, 32
        %v653 = vpop.permute.xlu0 %652
        %654 = vrot.lane.b32.xlu0 %v329, 32
        %v655 = vpop.permute.xlu0 %654
        %656 = vrot.lane.b32.xlu0 %v330, 32
        %v657 = vpop.permute.xlu0 %656
        %658 = vrot.lane.b32.xlu0 %v331, 32
        %v659 = vpop.permute.xlu0 %658
        %660 = vrot.lane.b32.xlu0 %v332, 32
        %v661 = vpop.permute.xlu0 %660
        %662 = vrot.lane.b32.xlu0 %v333, 32
        %v663 = vpop.permute.xlu0 %662
        %664 = vrot.lane.b32.xlu0 %v334, 32
        %v665 = vpop.permute.xlu0 %664
        %666 = vrot.lane.b32.xlu0 %v335, 32
        %v667 = vpop.permute.xlu0 %666
        %668 = vrot.lane.b32.xlu0 %v336, 32
        %v669 = vpop.permute.xlu0 %668
        %670 = vrot.lane.b32.xlu0 %v337, 32
        %v671 = vpop.permute.xlu0 %670
        %672 = vrot.lane.b32.xlu0 %v338, 32
        %v673 = vpop.permute.xlu0 %672
        %674 = vrot.lane.b32.xlu0 %v339, 32
        %v675 = vpop.permute.xlu0 %674
        %v676 = vunpack.c.l.b16 %v292
        %v677 = vunpack.c.l.b16 %v293
        %v678 = vunpack.c.l.b16 %v294
        %v679 = vunpack.c.l.b16 %v295
        %v680 = vunpack.c.l.b16 %v296
        %v681 = vunpack.c.l.b16 %v297
        %v682 = vunpack.c.l.b16 %v298
        %v683 = vunpack.c.l.b16 %v299
        %v684 = vunpack.c.l.b16 %v300
        %v685 = vunpack.c.l.b16 %v301
        %v686 = vunpack.c.l.b16 %v302
        %v687 = vunpack.c.l.b16 %v303
        %v688 = vunpack.c.l.b16 %v304
        %v689 = vunpack.c.l.b16 %v305
        %v690 = vunpack.c.l.b16 %v306
        %v691 = vunpack.c.l.b16 %v307
        %v692 = vpack.c.b16 %v677, %v676
        %v693 = vpack.c.b16 %v679, %v678
        %v694 = vpack.c.b16 %v681, %v680
        %v695 = vpack.c.b16 %v683, %v682
        %v696 = vpack.c.b16 %v685, %v684
        %v697 = vpack.c.b16 %v687, %v686
        %v698 = vpack.c.b16 %v689, %v688
        %v699 = vpack.c.b16 %v691, %v690
        %v700 = vunpack.c.l.b16 %v308
        %v701 = vunpack.c.l.b16 %v309
        %v702 = vunpack.c.l.b16 %v310
        %v703 = vunpack.c.l.b16 %v311
        %v704 = vunpack.c.l.b16 %v312
        %v705 = vunpack.c.l.b16 %v313
        %v706 = vunpack.c.l.b16 %v314
        %v707 = vunpack.c.l.b16 %v315
        %v708 = vunpack.c.l.b16 %v316
        %v709 = vunpack.c.l.b16 %v317
        %v710 = vunpack.c.l.b16 %v318
        %v711 = vunpack.c.l.b16 %v319
        %v712 = vunpack.c.l.b16 %v320
        %v713 = vunpack.c.l.b16 %v321
        %v714 = vunpack.c.l.b16 %v322
        %v715 = vunpack.c.l.b16 %v323
        %v716 = vpack.c.b16 %v701, %v700
        %v717 = vpack.c.b16 %v703, %v702
        %v718 = vpack.c.b16 %v705, %v704
        %v719 = vpack.c.b16 %v707, %v706
        %v720 = vpack.c.b16 %v709, %v708
        %v721 = vpack.c.b16 %v711, %v710
        %v722 = vpack.c.b16 %v713, %v712
        %v723 = vpack.c.b16 %v715, %v714
        %vm724 = vcmask 261120
        %v726 = vsel %vm724, %v692, 0
        %v729 = vsel %vm724, %v693, 0
        %v732 = vsel %vm724, %v694, 0
        %v735 = vsel %vm724, %v695, 0
        %v738 = vsel %vm724, %v696, 0
        %v741 = vsel %vm724, %v697, 0
        %v744 = vsel %vm724, %v698, 0
        %v747 = vsel %vm724, %v699, 0
        %v750 = vsel %vm724, %v716, 0
        %v753 = vsel %vm724, %v717, 0
        %v756 = vsel %vm724, %v718, 0
        %v759 = vsel %vm724, %v719, 0
        %v762 = vsel %vm724, %v720, 0
        %v765 = vsel %vm724, %v721, 0
        %v768 = vsel %vm724, %v722, 0
        %v771 = vsel %vm724, %v723, 0
        %773 = vmatprep.subr.bf16.mxu0 0
        %774 = vmatpush1.bf16.xpose.msra.mxu0 %v771
        %775 = vmatprep.subr.bf16.mxu0 0
        %776 = vmatpush1.bf16.xpose.msra.mxu0 %v768
        %777 = vmatprep.subr.bf16.mxu0 0
        %778 = vmatpush1.bf16.xpose.msra.mxu0 %v765
        %779 = vmatprep.subr.bf16.mxu0 0
        %780 = vmatpush1.bf16.xpose.msra.mxu0 %v762
        %781 = vmatprep.subr.bf16.mxu0 0
        %782 = vmatpush1.bf16.xpose.msra.mxu0 %v759
        %783 = vmatprep.subr.bf16.mxu0 0
        %784 = vmatpush1.bf16.xpose.msra.mxu0 %v756
        %785 = vmatprep.subr.bf16.mxu0 0
        %786 = vmatpush1.bf16.xpose.msra.mxu0 %v753
        %787 = vmatprep.subr.bf16.mxu0 0
        %788 = vmatpush1.bf16.xpose.msra.mxu0 %v750
        %789 = vmatprep.subr.bf16.mxu0 0
        %790 = vmatpush2.bf16.xpose.msra.mxu0 0
        %791 = vmatprep.subr.bf16.mxu0 0
        %792 = vmatpush2.bf16.xpose.msra.mxu0 0
        %793 = vmatprep.subr.bf16.mxu0 0
        %794 = vmatpush2.bf16.xpose.msra.mxu0 0
        %795 = vmatprep.subr.bf16.mxu0 0
        %796 = vmatpush2.bf16.xpose.msra.mxu0 0
        %797 = vmatprep.subr.bf16.mxu0 0
        %798 = vmatpush2.bf16.xpose.msra.mxu0 0
        %799 = vmatprep.subr.bf16.mxu0 0
        %800 = vmatpush2.bf16.xpose.msra.mxu0 0
        %801 = vmatprep.subr.bf16.mxu0 0
        %802 = vmatpush2.bf16.xpose.msra.mxu0 0
        %803 = vmatprep.subr.bf16.mxu0 0
        %804 = vmatpush2.bf16.xpose.msra.mxu0 0
        %805 = vmatprep.mubr.bf16.mxu0 0
        %806 = vmatmul.mubr.bf16.gmra.mxu0 %v726
        %v807 = vpop.f32.mrf.mxu0
        %v808 = vadd.f32 0.0, %v807
        %v809 = vpop.f32.mrf.mxu0
        %v810 = vpop.f32.mrf.mxu0
        %v811 = vadd.f32 0.0, %v810
        %v812 = vpop.f32.mrf.mxu0
        %813 = vmatprep.mubr.bf16.mxu0 0
        %814 = vmatmul.mubr.bf16.gmra.mxu0 %v729
        %v815 = vpop.f32.mrf.mxu0
        %v816 = vadd.f32 0.0, %v815
        %v817 = vpop.f32.mrf.mxu0
        %v818 = vpop.f32.mrf.mxu0
        %v819 = vadd.f32 0.0, %v818
        %v820 = vpop.f32.mrf.mxu0
        %821 = vmatprep.mubr.bf16.mxu0 0
        %822 = vmatmul.mubr.bf16.gmra.mxu0 %v732
        %v823 = vpop.f32.mrf.mxu0
        %v824 = vadd.f32 0.0, %v823
        %v825 = vpop.f32.mrf.mxu0
        %v826 = vpop.f32.mrf.mxu0
        %v827 = vadd.f32 0.0, %v826
        %v828 = vpop.f32.mrf.mxu0
        %829 = vmatprep.mubr.bf16.mxu0 0
        %830 = vmatmul.mubr.bf16.gmra.mxu0 %v735
        %v831 = vpop.f32.mrf.mxu0
        %v832 = vadd.f32 0.0, %v831
        %v833 = vpop.f32.mrf.mxu0
        %v834 = vpop.f32.mrf.mxu0
        %v835 = vadd.f32 0.0, %v834
        %v836 = vpop.f32.mrf.mxu0
        %837 = vmatprep.mubr.bf16.mxu0 0
        %838 = vmatmul.mubr.bf16.gmra.mxu0 %v738
        %v839 = vpop.f32.mrf.mxu0
        %v840 = vadd.f32 0.0, %v839
        %v841 = vpop.f32.mrf.mxu0
        %v842 = vpop.f32.mrf.mxu0
        %v843 = vadd.f32 0.0, %v842
        %v844 = vpop.f32.mrf.mxu0
        %845 = vmatprep.mubr.bf16.mxu0 0
        %846 = vmatmul.mubr.bf16.gmra.mxu0 %v741
        %v847 = vpop.f32.mrf.mxu0
        %v848 = vadd.f32 0.0, %v847
        %v849 = vpop.f32.mrf.mxu0
        %v850 = vpop.f32.mrf.mxu0
        %v851 = vadd.f32 0.0, %v850
        %v852 = vpop.f32.mrf.mxu0
        %853 = vmatprep.mubr.bf16.mxu0 0
        %854 = vmatmul.mubr.bf16.gmra.mxu0 %v744
        %v855 = vpop.f32.mrf.mxu0
        %v856 = vadd.f32 0.0, %v855
        %v857 = vpop.f32.mrf.mxu0
        %v858 = vpop.f32.mrf.mxu0
        %v859 = vadd.f32 0.0, %v858
        %v860 = vpop.f32.mrf.mxu0
        %861 = vmatprep.mubr.bf16.mxu0 0
        %862 = vmatmul.mubr.bf16.gmra.mxu0 %v747
        %v863 = vpop.f32.mrf.mxu0
        %v864 = vadd.f32 0.0, %v863
        %v865 = vpop.f32.mrf.mxu0
        %v866 = vpop.f32.mrf.mxu0
        %v867 = vadd.f32 0.0, %v866
        %v868 = vpop.f32.mrf.mxu0
        %869 = vdwg.mxu0
        %v870 = vunpack.c.l.b16 %v357
        %v871 = vunpack.c.l.b16 %v359
        %v872 = vunpack.c.l.b16 %v361
        %v873 = vunpack.c.l.b16 %v363
        %v874 = vunpack.c.l.b16 %v365
        %v875 = vunpack.c.l.b16 %v367
        %v876 = vunpack.c.l.b16 %v369
        %v877 = vunpack.c.l.b16 %v371
        %v878 = vunpack.c.l.b16 %v373
        %v879 = vunpack.c.l.b16 %v375
        %v880 = vunpack.c.l.b16 %v377
        %v881 = vunpack.c.l.b16 %v379
        %v882 = vunpack.c.l.b16 %v381
        %v883 = vunpack.c.l.b16 %v383
        %v884 = vunpack.c.l.b16 %v385
        %v885 = vunpack.c.l.b16 %v387
        %v886 = vpack.c.b16 %v871, %v870
        %v887 = vpack.c.b16 %v873, %v872
        %v888 = vpack.c.b16 %v875, %v874
        %v889 = vpack.c.b16 %v877, %v876
        %v890 = vpack.c.b16 %v879, %v878
        %v891 = vpack.c.b16 %v881, %v880
        %v892 = vpack.c.b16 %v883, %v882
        %v893 = vpack.c.b16 %v885, %v884
        %v894 = vunpack.c.l.b16 %v469
        %v895 = vunpack.c.l.b16 %v471
        %v896 = vunpack.c.l.b16 %v473
        %v897 = vunpack.c.l.b16 %v475
        %v898 = vunpack.c.l.b16 %v477
        %v899 = vunpack.c.l.b16 %v479
        %v900 = vunpack.c.l.b16 %v481
        %v901 = vunpack.c.l.b16 %v483
        %v902 = vunpack.c.l.b16 %v485
        %v903 = vunpack.c.l.b16 %v487
        %v904 = vunpack.c.l.b16 %v489
        %v905 = vunpack.c.l.b16 %v491
        %v906 = vunpack.c.l.b16 %v493
        %v907 = vunpack.c.l.b16 %v495
        %v908 = vunpack.c.l.b16 %v497
        %v909 = vunpack.c.l.b16 %v499
        %v910 = vpack.c.b16 %v895, %v894
        %v911 = vpack.c.b16 %v897, %v896
        %v912 = vpack.c.b16 %v899, %v898
        %v913 = vpack.c.b16 %v901, %v900
        %v914 = vpack.c.b16 %v903, %v902
        %v915 = vpack.c.b16 %v905, %v904
        %v916 = vpack.c.b16 %v907, %v906
        %v917 = vpack.c.b16 %v909, %v908
        %v919 = vsel %vm724, %v886, 0
        %v922 = vsel %vm724, %v887, 0
        %v925 = vsel %vm724, %v888, 0
        %v928 = vsel %vm724, %v889, 0
        %v931 = vsel %vm724, %v890, 0
        %v934 = vsel %vm724, %v891, 0
        %v937 = vsel %vm724, %v892, 0
        %v940 = vsel %vm724, %v893, 0
        %v943 = vsel %vm724, %v910, 0
        %v946 = vsel %vm724, %v911, 0
        %v949 = vsel %vm724, %v912, 0
        %v952 = vsel %vm724, %v913, 0
        %v955 = vsel %vm724, %v914, 0
        %v958 = vsel %vm724, %v915, 0
        %v961 = vsel %vm724, %v916, 0
        %v964 = vsel %vm724, %v917, 0
        %966 = vmatprep.subr.bf16.mxu0 0
        %967 = vmatpush1.bf16.xpose.msra.mxu0 %v964
        %968 = vmatprep.subr.bf16.mxu0 0
        %969 = vmatpush1.bf16.xpose.msra.mxu0 %v961
        %970 = vmatprep.subr.bf16.mxu0 0
        %971 = vmatpush1.bf16.xpose.msra.mxu0 %v958
        %972 = vmatprep.subr.bf16.mxu0 0
        %973 = vmatpush1.bf16.xpose.msra.mxu0 %v955
        %974 = vmatprep.subr.bf16.mxu0 0
        %975 = vmatpush1.bf16.xpose.msra.mxu0 %v952
        %976 = vmatprep.subr.bf16.mxu0 0
        %977 = vmatpush1.bf16.xpose.msra.mxu0 %v949
        %978 = vmatprep.subr.bf16.mxu0 0
        %979 = vmatpush1.bf16.xpose.msra.mxu0 %v946
        %980 = vmatprep.subr.bf16.mxu0 0
        %981 = vmatpush1.bf16.xpose.msra.mxu0 %v943
        %982 = vmatprep.subr.bf16.mxu0 0
        %983 = vmatpush2.bf16.xpose.msra.mxu0 0
        %984 = vmatprep.subr.bf16.mxu0 0
        %985 = vmatpush2.bf16.xpose.msra.mxu0 0
        %986 = vmatprep.subr.bf16.mxu0 0
        %987 = vmatpush2.bf16.xpose.msra.mxu0 0
        %988 = vmatprep.subr.bf16.mxu0 0
        %989 = vmatpush2.bf16.xpose.msra.mxu0 0
        %990 = vmatprep.subr.bf16.mxu0 0
        %991 = vmatpush2.bf16.xpose.msra.mxu0 0
        %992 = vmatprep.subr.bf16.mxu0 0
        %993 = vmatpush2.bf16.xpose.msra.mxu0 0
        %994 = vmatprep.subr.bf16.mxu0 0
        %995 = vmatpush2.bf16.xpose.msra.mxu0 0
        %996 = vmatprep.subr.bf16.mxu0 0
        %997 = vmatpush2.bf16.xpose.msra.mxu0 0
        %998 = vmatprep.mubr.bf16.mxu0 0
        %999 = vmatmul.mubr.bf16.gmra.mxu0 %v919
        %v1000 = vpop.f32.mrf.mxu0
        %v1001 = vadd.f32 0.0, %v1000
        %v1002 = vpop.f32.mrf.mxu0
        %v1003 = vpop.f32.mrf.mxu0
        %v1004 = vadd.f32 0.0, %v1003
        %v1005 = vpop.f32.mrf.mxu0
        %1006 = vmatprep.mubr.bf16.mxu0 0
        %1007 = vmatmul.mubr.bf16.gmra.mxu0 %v922
        %v1008 = vpop.f32.mrf.mxu0
        %v1009 = vadd.f32 0.0, %v1008
        %v1010 = vpop.f32.mrf.mxu0
        %v1011 = vpop.f32.mrf.mxu0
        %v1012 = vadd.f32 0.0, %v1011
        %v1013 = vpop.f32.mrf.mxu0
        %1014 = vmatprep.mubr.bf16.mxu0 0
        %1015 = vmatmul.mubr.bf16.gmra.mxu0 %v925
        %v1016 = vpop.f32.mrf.mxu0
        %v1017 = vadd.f32 0.0, %v1016
        %v1018 = vpop.f32.mrf.mxu0
        %v1019 = vpop.f32.mrf.mxu0
        %v1020 = vadd.f32 0.0, %v1019
        %v1021 = vpop.f32.mrf.mxu0
        %1022 = vmatprep.mubr.bf16.mxu0 0
        %1023 = vmatmul.mubr.bf16.gmra.mxu0 %v928
        %v1024 = vpop.f32.mrf.mxu0
        %v1025 = vadd.f32 0.0, %v1024
        %v1026 = vpop.f32.mrf.mxu0
        %v1027 = vpop.f32.mrf.mxu0
        %v1028 = vadd.f32 0.0, %v1027
        %v1029 = vpop.f32.mrf.mxu0
        %1030 = vmatprep.mubr.bf16.mxu0 0
        %1031 = vmatmul.mubr.bf16.gmra.mxu0 %v931
        %v1032 = vpop.f32.mrf.mxu0
        %v1033 = vadd.f32 0.0, %v1032
        %v1034 = vpop.f32.mrf.mxu0
        %v1035 = vpop.f32.mrf.mxu0
        %v1036 = vadd.f32 0.0, %v1035
        %v1037 = vpop.f32.mrf.mxu0
        %1038 = vmatprep.mubr.bf16.mxu0 0
        %1039 = vmatmul.mubr.bf16.gmra.mxu0 %v934
        %v1040 = vpop.f32.mrf.mxu0
        %v1041 = vadd.f32 0.0, %v1040
        %v1042 = vpop.f32.mrf.mxu0
        %v1043 = vpop.f32.mrf.mxu0
        %v1044 = vadd.f32 0.0, %v1043
        %v1045 = vpop.f32.mrf.mxu0
        %1046 = vmatprep.mubr.bf16.mxu0 0
        %1047 = vmatmul.mubr.bf16.gmra.mxu0 %v937
        %v1048 = vpop.f32.mrf.mxu0
        %v1049 = vadd.f32 0.0, %v1048
        %v1050 = vpop.f32.mrf.mxu0
        %v1051 = vpop.f32.mrf.mxu0
        %v1052 = vadd.f32 0.0, %v1051
        %v1053 = vpop.f32.mrf.mxu0
        %1054 = vmatprep.mubr.bf16.mxu0 0
        %1055 = vmatmul.mubr.bf16.gmra.mxu0 %v940
        %v1056 = vpop.f32.mrf.mxu0
        %v1057 = vadd.f32 0.0, %v1056
        %v1058 = vpop.f32.mrf.mxu0
        %v1059 = vpop.f32.mrf.mxu0
        %v1060 = vadd.f32 0.0, %v1059
        %v1061 = vpop.f32.mrf.mxu0
        %1062 = vdwg.mxu0
        %v1063 = vunpack.c.l.b16 %v389
        %v1064 = vunpack.c.l.b16 %v391
        %v1065 = vunpack.c.l.b16 %v393
        %v1066 = vunpack.c.l.b16 %v395
        %v1067 = vunpack.c.l.b16 %v397
        %v1068 = vunpack.c.l.b16 %v399
        %v1069 = vunpack.c.l.b16 %v401
        %v1070 = vunpack.c.l.b16 %v403
        %v1071 = vunpack.c.l.b16 %v405
        %v1072 = vunpack.c.l.b16 %v407
        %v1073 = vunpack.c.l.b16 %v409
        %v1074 = vunpack.c.l.b16 %v411
        %v1075 = vunpack.c.l.b16 %v413
        %v1076 = vunpack.c.l.b16 %v415
        %v1077 = vunpack.c.l.b16 %v417
        %v1078 = vunpack.c.l.b16 %v419
        %v1079 = vpack.c.b16 %v1064, %v1063
        %v1080 = vpack.c.b16 %v1066, %v1065
        %v1081 = vpack.c.b16 %v1068, %v1067
        %v1082 = vpack.c.b16 %v1070, %v1069
        %v1083 = vpack.c.b16 %v1072, %v1071
        %v1084 = vpack.c.b16 %v1074, %v1073
        %v1085 = vpack.c.b16 %v1076, %v1075
        %v1086 = vpack.c.b16 %v1078, %v1077
        %v1087 = vunpack.c.l.b16 %v501
        %v1088 = vunpack.c.l.b16 %v503
        %v1089 = vunpack.c.l.b16 %v505
        %v1090 = vunpack.c.l.b16 %v507
        %v1091 = vunpack.c.l.b16 %v509
        %v1092 = vunpack.c.l.b16 %v511
        %v1093 = vunpack.c.l.b16 %v513
        %v1094 = vunpack.c.l.b16 %v515
        %v1095 = vunpack.c.l.b16 %v517
        %v1096 = vunpack.c.l.b16 %v519
        %v1097 = vunpack.c.l.b16 %v521
        %v1098 = vunpack.c.l.b16 %v523
        %v1099 = vunpack.c.l.b16 %v525
        %v1100 = vunpack.c.l.b16 %v527
        %v1101 = vunpack.c.l.b16 %v529
        %v1102 = vunpack.c.l.b16 %v531
        %v1103 = vpack.c.b16 %v1088, %v1087
        %v1104 = vpack.c.b16 %v1090, %v1089
        %v1105 = vpack.c.b16 %v1092, %v1091
        %v1106 = vpack.c.b16 %v1094, %v1093
        %v1107 = vpack.c.b16 %v1096, %v1095
        %v1108 = vpack.c.b16 %v1098, %v1097
        %v1109 = vpack.c.b16 %v1100, %v1099
        %v1110 = vpack.c.b16 %v1102, %v1101
        %v1112 = vsel %vm724, %v1079, 0
        %v1115 = vsel %vm724, %v1080, 0
        %v1118 = vsel %vm724, %v1081, 0
        %v1121 = vsel %vm724, %v1082, 0
        %v1124 = vsel %vm724, %v1083, 0
        %v1127 = vsel %vm724, %v1084, 0
        %v1130 = vsel %vm724, %v1085, 0
        %v1133 = vsel %vm724, %v1086, 0
        %v1136 = vsel %vm724, %v1103, 0
        %v1139 = vsel %vm724, %v1104, 0
        %v1142 = vsel %vm724, %v1105, 0
        %v1145 = vsel %vm724, %v1106, 0
        %v1148 = vsel %vm724, %v1107, 0
        %v1151 = vsel %vm724, %v1108, 0
        %v1154 = vsel %vm724, %v1109, 0
        %v1157 = vsel %vm724, %v1110, 0
        %1159 = vmatprep.subr.bf16.mxu0 0
        %1160 = vmatpush1.bf16.xpose.msra.mxu0 %v1157
        %1161 = vmatprep.subr.bf16.mxu0 0
        %1162 = vmatpush1.bf16.xpose.msra.mxu0 %v1154
        %1163 = vmatprep.subr.bf16.mxu0 0
        %1164 = vmatpush1.bf16.xpose.msra.mxu0 %v1151
        %1165 = vmatprep.subr.bf16.mxu0 0
        %1166 = vmatpush1.bf16.xpose.msra.mxu0 %v1148
        %1167 = vmatprep.subr.bf16.mxu0 0
        %1168 = vmatpush1.bf16.xpose.msra.mxu0 %v1145
        %1169 = vmatprep.subr.bf16.mxu0 0
        %1170 = vmatpush1.bf16.xpose.msra.mxu0 %v1142
        %1171 = vmatprep.subr.bf16.mxu0 0
        %1172 = vmatpush1.bf16.xpose.msra.mxu0 %v1139
        %1173 = vmatprep.subr.bf16.mxu0 0
        %1174 = vmatpush1.bf16.xpose.msra.mxu0 %v1136
        %1175 = vmatprep.subr.bf16.mxu0 0
        %1176 = vmatpush2.bf16.xpose.msra.mxu0 0
        %1177 = vmatprep.subr.bf16.mxu0 0
        %1178 = vmatpush2.bf16.xpose.msra.mxu0 0
        %1179 = vmatprep.subr.bf16.mxu0 0
        %1180 = vmatpush2.bf16.xpose.msra.mxu0 0
        %1181 = vmatprep.subr.bf16.mxu0 0
        %1182 = vmatpush2.bf16.xpose.msra.mxu0 0
        %1183 = vmatprep.subr.bf16.mxu0 0
        %1184 = vmatpush2.bf16.xpose.msra.mxu0 0
        %1185 = vmatprep.subr.bf16.mxu0 0
        %1186 = vmatpush2.bf16.xpose.msra.mxu0 0
        %1187 = vmatprep.subr.bf16.mxu0 0
        %1188 = vmatpush2.bf16.xpose.msra.mxu0 0
        %1189 = vmatprep.subr.bf16.mxu0 0
        %1190 = vmatpush2.bf16.xpose.msra.mxu0 0
        %1191 = vmatprep.mubr.bf16.mxu0 0
        %1192 = vmatmul.mubr.bf16.gmra.mxu0 %v1112
        %v1193 = vpop.f32.mrf.mxu0
        %v1194 = vadd.f32 0.0, %v1193
        %v1195 = vpop.f32.mrf.mxu0
        %v1196 = vpop.f32.mrf.mxu0
        %v1197 = vadd.f32 0.0, %v1196
        %v1198 = vpop.f32.mrf.mxu0
        %1199 = vmatprep.mubr.bf16.mxu0 0
        %1200 = vmatmul.mubr.bf16.gmra.mxu0 %v1115
        %v1201 = vpop.f32.mrf.mxu0
        %v1202 = vadd.f32 0.0, %v1201
        %v1203 = vpop.f32.mrf.mxu0
        %v1204 = vpop.f32.mrf.mxu0
        %v1205 = vadd.f32 0.0, %v1204
        %v1206 = vpop.f32.mrf.mxu0
        %1207 = vmatprep.mubr.bf16.mxu0 0
        %1208 = vmatmul.mubr.bf16.gmra.mxu0 %v1118
        %v1209 = vpop.f32.mrf.mxu0
        %v1210 = vadd.f32 0.0, %v1209
        %v1211 = vpop.f32.mrf.mxu0
        %v1212 = vpop.f32.mrf.mxu0
        %v1213 = vadd.f32 0.0, %v1212
        %v1214 = vpop.f32.mrf.mxu0
        %1215 = vmatprep.mubr.bf16.mxu0 0
        %1216 = vmatmul.mubr.bf16.gmra.mxu0 %v1121
        %v1217 = vpop.f32.mrf.mxu0
        %v1218 = vadd.f32 0.0, %v1217
        %v1219 = vpop.f32.mrf.mxu0
        %v1220 = vpop.f32.mrf.mxu0
        %v1221 = vadd.f32 0.0, %v1220
        %v1222 = vpop.f32.mrf.mxu0
        %1223 = vmatprep.mubr.bf16.mxu0 0
        %1224 = vmatmul.mubr.bf16.gmra.mxu0 %v1124
        %v1225 = vpop.f32.mrf.mxu0
        %v1226 = vadd.f32 0.0, %v1225
        %v1227 = vpop.f32.mrf.mxu0
        %v1228 = vpop.f32.mrf.mxu0
        %v1229 = vadd.f32 0.0, %v1228
        %v1230 = vpop.f32.mrf.mxu0
        %1231 = vmatprep.mubr.bf16.mxu0 0
        %1232 = vmatmul.mubr.bf16.gmra.mxu0 %v1127
        %v1233 = vpop.f32.mrf.mxu0
        %v1234 = vadd.f32 0.0, %v1233
        %v1235 = vpop.f32.mrf.mxu0
        %v1236 = vpop.f32.mrf.mxu0
        %v1237 = vadd.f32 0.0, %v1236
        %v1238 = vpop.f32.mrf.mxu0
        %1239 = vmatprep.mubr.bf16.mxu0 0
        %1240 = vmatmul.mubr.bf16.gmra.mxu0 %v1130
        %v1241 = vpop.f32.mrf.mxu0
        %v1242 = vadd.f32 0.0, %v1241
        %v1243 = vpop.f32.mrf.mxu0
        %v1244 = vpop.f32.mrf.mxu0
        %v1245 = vadd.f32 0.0, %v1244
        %v1246 = vpop.f32.mrf.mxu0
        %1247 = vmatprep.mubr.bf16.mxu0 0
        %1248 = vmatmul.mubr.bf16.gmra.mxu0 %v1133
        %v1249 = vpop.f32.mrf.mxu0
        %v1250 = vadd.f32 0.0, %v1249
        %v1251 = vpop.f32.mrf.mxu0
        %v1252 = vpop.f32.mrf.mxu0
        %v1253 = vadd.f32 0.0, %v1252
        %v1254 = vpop.f32.mrf.mxu0
        %1255 = vdwg.mxu0
        %v1256 = vunpack.c.l.b16 %v421
        %v1257 = vunpack.c.l.b16 %v423
        %v1258 = vunpack.c.l.b16 %v425
        %v1259 = vunpack.c.l.b16 %v427
        %v1260 = vunpack.c.l.b16 %v429
        %v1261 = vunpack.c.l.b16 %v431
        %v1262 = vunpack.c.l.b16 %v433
        %v1263 = vunpack.c.l.b16 %v435
        %v1264 = vunpack.c.l.b16 %v437
        %v1265 = vunpack.c.l.b16 %v439
        %v1266 = vunpack.c.l.b16 %v441
        %v1267 = vunpack.c.l.b16 %v443
        %v1268 = vunpack.c.l.b16 %v445
        %v1269 = vunpack.c.l.b16 %v447
        %v1270 = vunpack.c.l.b16 %v449
        %v1271 = vunpack.c.l.b16 %v451
        %v1272 = vpack.c.b16 %v1257, %v1256
        %v1273 = vpack.c.b16 %v1259, %v1258
        %v1274 = vpack.c.b16 %v1261, %v1260
        %v1275 = vpack.c.b16 %v1263, %v1262
        %v1276 = vpack.c.b16 %v1265, %v1264
        %v1277 = vpack.c.b16 %v1267, %v1266
        %v1278 = vpack.c.b16 %v1269, %v1268
        %v1279 = vpack.c.b16 %v1271, %v1270
        %v1280 = vunpack.c.l.b16 %v533
        %v1281 = vunpack.c.l.b16 %v535
        %v1282 = vunpack.c.l.b16 %v537
        %v1283 = vunpack.c.l.b16 %v539
        %v1284 = vunpack.c.l.b16 %v541
        %v1285 = vunpack.c.l.b16 %v543
        %v1286 = vunpack.c.l.b16 %v545
        %v1287 = vunpack.c.l.b16 %v547
        %v1288 = vunpack.c.l.b16 %v549
        %v1289 = vunpack.c.l.b16 %v551
        %v1290 = vunpack.c.l.b16 %v553
        %v1291 = vunpack.c.l.b16 %v555
        %v1292 = vunpack.c.l.b16 %v557
        %v1293 = vunpack.c.l.b16 %v559
        %v1294 = vunpack.c.l.b16 %v561
        %v1295 = vunpack.c.l.b16 %v563
        %v1296 = vpack.c.b16 %v1281, %v1280
        %v1297 = vpack.c.b16 %v1283, %v1282
        %v1298 = vpack.c.b16 %v1285, %v1284
        %v1299 = vpack.c.b16 %v1287, %v1286
        %v1300 = vpack.c.b16 %v1289, %v1288
        %v1301 = vpack.c.b16 %v1291, %v1290
        %v1302 = vpack.c.b16 %v1293, %v1292
        %v1303 = vpack.c.b16 %v1295, %v1294
        %v1305 = vsel %vm724, %v1272, 0
        %v1308 = vsel %vm724, %v1273, 0
        %v1311 = vsel %vm724, %v1274, 0
        %v1314 = vsel %vm724, %v1275, 0
        %v1317 = vsel %vm724, %v1276, 0
        %v1320 = vsel %vm724, %v1277, 0
        %v1323 = vsel %vm724, %v1278, 0
        %v1326 = vsel %vm724, %v1279, 0
        %v1329 = vsel %vm724, %v1296, 0
        %v1332 = vsel %vm724, %v1297, 0
        %v1335 = vsel %vm724, %v1298, 0
        %v1338 = vsel %vm724, %v1299, 0
        %v1341 = vsel %vm724, %v1300, 0
        %v1344 = vsel %vm724, %v1301, 0
        %v1347 = vsel %vm724, %v1302, 0
        %v1350 = vsel %vm724, %v1303, 0
        %1352 = vmatprep.subr.bf16.mxu0 0
        %1353 = vmatpush1.bf16.xpose.msra.mxu0 %v1350
        %1354 = vmatprep.subr.bf16.mxu0 0
        %1355 = vmatpush1.bf16.xpose.msra.mxu0 %v1347
        %1356 = vmatprep.subr.bf16.mxu0 0
        %1357 = vmatpush1.bf16.xpose.msra.mxu0 %v1344
        %1358 = vmatprep.subr.bf16.mxu0 0
        %1359 = vmatpush1.bf16.xpose.msra.mxu0 %v1341
        %1360 = vmatprep.subr.bf16.mxu0 0
        %1361 = vmatpush1.bf16.xpose.msra.mxu0 %v1338
        %1362 = vmatprep.subr.bf16.mxu0 0
        %1363 = vmatpush1.bf16.xpose.msra.mxu0 %v1335
        %1364 = vmatprep.subr.bf16.mxu0 0
        %1365 = vmatpush1.bf16.xpose.msra.mxu0 %v1332
        %1366 = vmatprep.subr.bf16.mxu0 0
        %1367 = vmatpush1.bf16.xpose.msra.mxu0 %v1329
        %1368 = vmatprep.subr.bf16.mxu0 0
        %1369 = vmatpush2.bf16.xpose.msra.mxu0 0
        %1370 = vmatprep.subr.bf16.mxu0 0
        %1371 = vmatpush2.bf16.xpose.msra.mxu0 0
        %1372 = vmatprep.subr.bf16.mxu0 0
        %1373 = vmatpush2.bf16.xpose.msra.mxu0 0
        %1374 = vmatprep.subr.bf16.mxu0 0
        %1375 = vmatpush2.bf16.xpose.msra.mxu0 0
        %1376 = vmatprep.subr.bf16.mxu0 0
        %1377 = vmatpush2.bf16.xpose.msra.mxu0 0
        %1378 = vmatprep.subr.bf16.mxu0 0
        %1379 = vmatpush2.bf16.xpose.msra.mxu0 0
        %1380 = vmatprep.subr.bf16.mxu0 0
        %1381 = vmatpush2.bf16.xpose.msra.mxu0 0
        %1382 = vmatprep.subr.bf16.mxu0 0
        %1383 = vmatpush2.bf16.xpose.msra.mxu0 0
        %1384 = vmatprep.mubr.bf16.mxu0 0
        %1385 = vmatmul.mubr.bf16.gmra.mxu0 %v1305
        %v1386 = vpop.f32.mrf.mxu0
        %v1387 = vadd.f32 0.0, %v1386
        %v1388 = vpop.f32.mrf.mxu0
        %v1389 = vpop.f32.mrf.mxu0
        %v1390 = vadd.f32 0.0, %v1389
        %v1391 = vpop.f32.mrf.mxu0
        %1392 = vmatprep.mubr.bf16.mxu0 0
        %1393 = vmatmul.mubr.bf16.gmra.mxu0 %v1308
        %v1394 = vpop.f32.mrf.mxu0
        %v1395 = vadd.f32 0.0, %v1394
        %v1396 = vpop.f32.mrf.mxu0
        %v1397 = vpop.f32.mrf.mxu0
        %v1398 = vadd.f32 0.0, %v1397
        %v1399 = vpop.f32.mrf.mxu0
        %1400 = vmatprep.mubr.bf16.mxu0 0
        %1401 = vmatmul.mubr.bf16.gmra.mxu0 %v1311
        %v1402 = vpop.f32.mrf.mxu0
        %v1403 = vadd.f32 0.0, %v1402
        %v1404 = vpop.f32.mrf.mxu0
        %v1405 = vpop.f32.mrf.mxu0
        %v1406 = vadd.f32 0.0, %v1405
        %v1407 = vpop.f32.mrf.mxu0
        %1408 = vmatprep.mubr.bf16.mxu0 0
        %1409 = vmatmul.mubr.bf16.gmra.mxu0 %v1314
        %v1410 = vpop.f32.mrf.mxu0
        %v1411 = vadd.f32 0.0, %v1410
        %v1412 = vpop.f32.mrf.mxu0
        %v1413 = vpop.f32.mrf.mxu0
        %v1414 = vadd.f32 0.0, %v1413
        %v1415 = vpop.f32.mrf.mxu0
        %1416 = vmatprep.mubr.bf16.mxu0 0
        %1417 = vmatmul.mubr.bf16.gmra.mxu0 %v1317
        %v1418 = vpop.f32.mrf.mxu0
        %v1419 = vadd.f32 0.0, %v1418
        %v1420 = vpop.f32.mrf.mxu0
        %v1421 = vpop.f32.mrf.mxu0
        %v1422 = vadd.f32 0.0, %v1421
        %v1423 = vpop.f32.mrf.mxu0
        %1424 = vmatprep.mubr.bf16.mxu0 0
        %1425 = vmatmul.mubr.bf16.gmra.mxu0 %v1320
        %v1426 = vpop.f32.mrf.mxu0
        %v1427 = vadd.f32 0.0, %v1426
        %v1428 = vpop.f32.mrf.mxu0
        %v1429 = vpop.f32.mrf.mxu0
        %v1430 = vadd.f32 0.0, %v1429
        %v1431 = vpop.f32.mrf.mxu0
        %1432 = vmatprep.mubr.bf16.mxu0 0
        %1433 = vmatmul.mubr.bf16.gmra.mxu0 %v1323
        %v1434 = vpop.f32.mrf.mxu0
        %v1435 = vadd.f32 0.0, %v1434
        %v1436 = vpop.f32.mrf.mxu0
        %v1437 = vpop.f32.mrf.mxu0
        %v1438 = vadd.f32 0.0, %v1437
        %v1439 = vpop.f32.mrf.mxu0
        %1440 = vmatprep.mubr.bf16.mxu0 0
        %1441 = vmatmul.mubr.bf16.gmra.mxu0 %v1326
        %v1442 = vpop.f32.mrf.mxu0
        %v1443 = vadd.f32 0.0, %v1442
        %v1444 = vpop.f32.mrf.mxu0
        %v1445 = vpop.f32.mrf.mxu0
        %v1446 = vadd.f32 0.0, %v1445
        %v1447 = vpop.f32.mrf.mxu0
        %1448 = vdwg.mxu0
        %1449 = vmax.xlane.f32.xlu0 %v808
        %v1450 = vpop.xlane.xlu0 %1449
        %1451 = vmax.xlane.f32.xlu0 %v811
        %v1452 = vpop.xlane.xlu0 %1451
        %1453 = vmax.xlane.f32.xlu0 %v816
        %v1454 = vpop.xlane.xlu0 %1453
        %1455 = vmax.xlane.f32.xlu0 %v819
        %v1456 = vpop.xlane.xlu0 %1455
        %1457 = vmax.xlane.f32.xlu0 %v824
        %v1458 = vpop.xlane.xlu0 %1457
        %1459 = vmax.xlane.f32.xlu0 %v827
        %v1460 = vpop.xlane.xlu0 %1459
        %1461 = vmax.xlane.f32.xlu0 %v832
        %v1462 = vpop.xlane.xlu0 %1461
        %1463 = vmax.xlane.f32.xlu0 %v835
        %v1464 = vpop.xlane.xlu0 %1463
        %1465 = vmax.xlane.f32.xlu0 %v840
        %v1466 = vpop.xlane.xlu0 %1465
        %1467 = vmax.xlane.f32.xlu0 %v843
        %v1468 = vpop.xlane.xlu0 %1467
        %1469 = vmax.xlane.f32.xlu0 %v848
        %v1470 = vpop.xlane.xlu0 %1469
        %1471 = vmax.xlane.f32.xlu0 %v851
        %v1472 = vpop.xlane.xlu0 %1471
        %1473 = vmax.xlane.f32.xlu0 %v856
        %v1474 = vpop.xlane.xlu0 %1473
        %1475 = vmax.xlane.f32.xlu0 %v859
        %v1476 = vpop.xlane.xlu0 %1475
        %1477 = vmax.xlane.f32.xlu0 %v864
        %v1478 = vpop.xlane.xlu0 %1477
        %1479 = vmax.xlane.f32.xlu0 %v867
        %v1480 = vpop.xlane.xlu0 %1479
        %1481 = vmax.xlane.f32.xlu0 %v1001
        %v1482 = vpop.xlane.xlu0 %1481
        %1483 = vmax.xlane.f32.xlu0 %v1004
        %v1484 = vpop.xlane.xlu0 %1483
        %1485 = vmax.xlane.f32.xlu0 %v1009
        %v1486 = vpop.xlane.xlu0 %1485
        %1487 = vmax.xlane.f32.xlu0 %v1012
        %v1488 = vpop.xlane.xlu0 %1487
        %1489 = vmax.xlane.f32.xlu0 %v1017
        %v1490 = vpop.xlane.xlu0 %1489
        %1491 = vmax.xlane.f32.xlu0 %v1020
        %v1492 = vpop.xlane.xlu0 %1491
        %1493 = vmax.xlane.f32.xlu0 %v1025
        %v1494 = vpop.xlane.xlu0 %1493
        %1495 = vmax.xlane.f32.xlu0 %v1028
        %v1496 = vpop.xlane.xlu0 %1495
        %1497 = vmax.xlane.f32.xlu0 %v1033
        %v1498 = vpop.xlane.xlu0 %1497
        %1499 = vmax.xlane.f32.xlu0 %v1036
        %v1500 = vpop.xlane.xlu0 %1499
        %1501 = vmax.xlane.f32.xlu0 %v1041
        %v1502 = vpop.xlane.xlu0 %1501
        %1503 = vmax.xlane.f32.xlu0 %v1044
        %v1504 = vpop.xlane.xlu0 %1503
        %1505 = vmax.xlane.f32.xlu0 %v1049
        %v1506 = vpop.xlane.xlu0 %1505
        %1507 = vmax.xlane.f32.xlu0 %v1052
        %v1508 = vpop.xlane.xlu0 %1507
        %1509 = vmax.xlane.f32.xlu0 %v1057
        %v1510 = vpop.xlane.xlu0 %1509
        %1511 = vmax.xlane.f32.xlu0 %v1060
        %v1512 = vpop.xlane.xlu0 %1511
        %1513 = vmax.xlane.f32.xlu0 %v1194
        %v1514 = vpop.xlane.xlu0 %1513
        %1515 = vmax.xlane.f32.xlu0 %v1197
        %v1516 = vpop.xlane.xlu0 %1515
        %1517 = vmax.xlane.f32.xlu0 %v1202
        %v1518 = vpop.xlane.xlu0 %1517
        %1519 = vmax.xlane.f32.xlu0 %v1205
        %v1520 = vpop.xlane.xlu0 %1519
        %1521 = vmax.xlane.f32.xlu0 %v1210
        %v1522 = vpop.xlane.xlu0 %1521
        %1523 = vmax.xlane.f32.xlu0 %v1213
        %v1524 = vpop.xlane.xlu0 %1523
        %1525 = vmax.xlane.f32.xlu0 %v1218
        %v1526 = vpop.xlane.xlu0 %1525
        %1527 = vmax.xlane.f32.xlu0 %v1221
        %v1528 = vpop.xlane.xlu0 %1527
        %1529 = vmax.xlane.f32.xlu0 %v1226
        %v1530 = vpop.xlane.xlu0 %1529
        %1531 = vmax.xlane.f32.xlu0 %v1229
        %v1532 = vpop.xlane.xlu0 %1531
        %1533 = vmax.xlane.f32.xlu0 %v1234
        %v1534 = vpop.xlane.xlu0 %1533
        %1535 = vmax.xlane.f32.xlu0 %v1237
        %v1536 = vpop.xlane.xlu0 %1535
        %1537 = vmax.xlane.f32.xlu0 %v1242
        %v1538 = vpop.xlane.xlu0 %1537
        %1539 = vmax.xlane.f32.xlu0 %v1245
        %v1540 = vpop.xlane.xlu0 %1539
        %1541 = vmax.xlane.f32.xlu0 %v1250
        %v1542 = vpop.xlane.xlu0 %1541
        %1543 = vmax.xlane.f32.xlu0 %v1253
        %v1544 = vpop.xlane.xlu0 %1543
        %1545 = vmax.xlane.f32.xlu0 %v1387
        %v1546 = vpop.xlane.xlu0 %1545
        %1547 = vmax.xlane.f32.xlu0 %v1390
        %v1548 = vpop.xlane.xlu0 %1547
        %1549 = vmax.xlane.f32.xlu0 %v1395
        %v1550 = vpop.xlane.xlu0 %1549
        %1551 = vmax.xlane.f32.xlu0 %v1398
        %v1552 = vpop.xlane.xlu0 %1551
        %1553 = vmax.xlane.f32.xlu0 %v1403
        %v1554 = vpop.xlane.xlu0 %1553
        %1555 = vmax.xlane.f32.xlu0 %v1406
        %v1556 = vpop.xlane.xlu0 %1555
        %1557 = vmax.xlane.f32.xlu0 %v1411
        %v1558 = vpop.xlane.xlu0 %1557
        %1559 = vmax.xlane.f32.xlu0 %v1414
        %v1560 = vpop.xlane.xlu0 %1559
        %1561 = vmax.xlane.f32.xlu0 %v1419
        %v1562 = vpop.xlane.xlu0 %1561
        %1563 = vmax.xlane.f32.xlu0 %v1422
        %v1564 = vpop.xlane.xlu0 %1563
        %1565 = vmax.xlane.f32.xlu0 %v1427
        %v1566 = vpop.xlane.xlu0 %1565
        %1567 = vmax.xlane.f32.xlu0 %v1430
        %v1568 = vpop.xlane.xlu0 %1567
        %1569 = vmax.xlane.f32.xlu0 %v1435
        %v1570 = vpop.xlane.xlu0 %1569
        %1571 = vmax.xlane.f32.xlu0 %v1438
        %v1572 = vpop.xlane.xlu0 %1571
        %1573 = vmax.xlane.f32.xlu0 %v1443
        %v1574 = vpop.xlane.xlu0 %1573
        %1575 = vmax.xlane.f32.xlu0 %v1446
        %v1576 = vpop.xlane.xlu0 %1575
        %v1577 = vsub.f32 %v808, %v1450
        %v1578 = vsub.f32 %v811, %v1452
        %v1579 = vsub.f32 %v816, %v1454
        %v1580 = vsub.f32 %v819, %v1456
        %v1581 = vsub.f32 %v824, %v1458
        %v1582 = vsub.f32 %v827, %v1460
        %v1583 = vsub.f32 %v832, %v1462
        %v1584 = vsub.f32 %v835, %v1464
        %v1585 = vsub.f32 %v840, %v1466
        %v1586 = vsub.f32 %v843, %v1468
        %v1587 = vsub.f32 %v848, %v1470
        %v1588 = vsub.f32 %v851, %v1472
        %v1589 = vsub.f32 %v856, %v1474
        %v1590 = vsub.f32 %v859, %v1476
        %v1591 = vsub.f32 %v864, %v1478
        %v1592 = vsub.f32 %v867, %v1480
        %v1593 = vsub.f32 %v1001, %v1482
        %v1594 = vsub.f32 %v1004, %v1484
        %v1595 = vsub.f32 %v1009, %v1486
        %v1596 = vsub.f32 %v1012, %v1488
        %v1597 = vsub.f32 %v1017, %v1490
        %v1598 = vsub.f32 %v1020, %v1492
        %v1599 = vsub.f32 %v1025, %v1494
        %v1600 = vsub.f32 %v1028, %v1496
        %v1601 = vsub.f32 %v1033, %v1498
        %v1602 = vsub.f32 %v1036, %v1500
        %v1603 = vsub.f32 %v1041, %v1502
        %v1604 = vsub.f32 %v1044, %v1504
        %v1605 = vsub.f32 %v1049, %v1506
        %v1606 = vsub.f32 %v1052, %v1508
        %v1607 = vsub.f32 %v1057, %v1510
        %v1608 = vsub.f32 %v1060, %v1512
        %v1609 = vsub.f32 %v1194, %v1514
        %v1610 = vsub.f32 %v1197, %v1516
        %v1611 = vsub.f32 %v1202, %v1518
        %v1612 = vsub.f32 %v1205, %v1520
        %v1613 = vsub.f32 %v1210, %v1522
        %v1614 = vsub.f32 %v1213, %v1524
        %v1615 = vsub.f32 %v1218, %v1526
        %v1616 = vsub.f32 %v1221, %v1528
        %v1617 = vsub.f32 %v1226, %v1530
        %v1618 = vsub.f32 %v1229, %v1532
        %v1619 = vsub.f32 %v1234, %v1534
        %v1620 = vsub.f32 %v1237, %v1536
        %v1621 = vsub.f32 %v1242, %v1538
        %v1622 = vsub.f32 %v1245, %v1540
        %v1623 = vsub.f32 %v1250, %v1542
        %v1624 = vsub.f32 %v1253, %v1544
        %v1625 = vsub.f32 %v1387, %v1546
        %v1626 = vsub.f32 %v1390, %v1548
        %v1627 = vsub.f32 %v1395, %v1550
        %v1628 = vsub.f32 %v1398, %v1552
        %v1629 = vsub.f32 %v1403, %v1554
        %v1630 = vsub.f32 %v1406, %v1556
        %v1631 = vsub.f32 %v1411, %v1558
        %v1632 = vsub.f32 %v1414, %v1560
        %v1633 = vsub.f32 %v1419, %v1562
        %v1634 = vsub.f32 %v1422, %v1564
        %v1635 = vsub.f32 %v1427, %v1566
        %v1636 = vsub.f32 %v1430, %v1568
        %v1637 = vsub.f32 %v1435, %v1570
        %v1638 = vsub.f32 %v1438, %v1572
        %v1639 = vsub.f32 %v1443, %v1574
        %v1640 = vsub.f32 %v1446, %v1576
        %v1641 = vmul.f32 %v1577, 1.442695
        %v1642 = vpow.pop %v1641
        %v1643 = vmul.f32 %v1578, 1.442695
        %v1644 = vpow.pop %v1643
        %v1645 = vmul.f32 %v1579, 1.442695
        %v1646 = vpow.pop %v1645
        %v1647 = vmul.f32 %v1580, 1.442695
        %v1648 = vpow.pop %v1647
        %v1649 = vmul.f32 %v1581, 1.442695
        %v1650 = vpow.pop %v1649
        %v1651 = vmul.f32 %v1582, 1.442695
        %v1652 = vpow.pop %v1651
        %v1653 = vmul.f32 %v1583, 1.442695
        %v1654 = vpow.pop %v1653
        %v1655 = vmul.f32 %v1584, 1.442695
        %v1656 = vpow.pop %v1655
        %v1657 = vmul.f32 %v1585, 1.442695
        %v1658 = vpow.pop %v1657
        %v1659 = vmul.f32 %v1586, 1.442695
        %v1660 = vpow.pop %v1659
        %v1661 = vmul.f32 %v1587, 1.442695
        %v1662 = vpow.pop %v1661
        %v1663 = vmul.f32 %v1588, 1.442695
        %v1664 = vpow.pop %v1663
        %v1665 = vmul.f32 %v1589, 1.442695
        %v1666 = vpow.pop %v1665
        %v1667 = vmul.f32 %v1590, 1.442695
        %v1668 = vpow.pop %v1667
        %v1669 = vmul.f32 %v1591, 1.442695
        %v1670 = vpow.pop %v1669
        %v1671 = vmul.f32 %v1592, 1.442695
        %v1672 = vpow.pop %v1671
        %v1673 = vmul.f32 %v1593, 1.442695
        %v1674 = vpow.pop %v1673
        %v1675 = vmul.f32 %v1594, 1.442695
        %v1676 = vpow.pop %v1675
        %v1677 = vmul.f32 %v1595, 1.442695
        %v1678 = vpow.pop %v1677
        %v1679 = vmul.f32 %v1596, 1.442695
        %v1680 = vpow.pop %v1679
        %v1681 = vmul.f32 %v1597, 1.442695
        %v1682 = vpow.pop %v1681
        %v1683 = vmul.f32 %v1598, 1.442695
        %v1684 = vpow.pop %v1683
        %v1685 = vmul.f32 %v1599, 1.442695
        %v1686 = vpow.pop %v1685
        %v1687 = vmul.f32 %v1600, 1.442695
        %v1688 = vpow.pop %v1687
        %v1689 = vmul.f32 %v1601, 1.442695
        %v1690 = vpow.pop %v1689
        %v1691 = vmul.f32 %v1602, 1.442695
        %v1692 = vpow.pop %v1691
        %v1693 = vmul.f32 %v1603, 1.442695
        %v1694 = vpow.pop %v1693
        %v1695 = vmul.f32 %v1604, 1.442695
        %v1696 = vpow.pop %v1695
        %v1697 = vmul.f32 %v1605, 1.442695
        %v1698 = vpow.pop %v1697
        %v1699 = vmul.f32 %v1606, 1.442695
        %v1700 = vpow.pop %v1699
        %v1701 = vmul.f32 %v1607, 1.442695
        %v1702 = vpow.pop %v1701
        %v1703 = vmul.f32 %v1608, 1.442695
        %v1704 = vpow.pop %v1703
        %v1705 = vmul.f32 %v1609, 1.442695
        %v1706 = vpow.pop %v1705
        %v1707 = vmul.f32 %v1610, 1.442695
        %v1708 = vpow.pop %v1707
        %v1709 = vmul.f32 %v1611, 1.442695
        %v1710 = vpow.pop %v1709
        %v1711 = vmul.f32 %v1612, 1.442695
        %v1712 = vpow.pop %v1711
        %v1713 = vmul.f32 %v1613, 1.442695
        %v1714 = vpow.pop %v1713
        %v1715 = vmul.f32 %v1614, 1.442695
        %v1716 = vpow.pop %v1715
        %v1717 = vmul.f32 %v1615, 1.442695
        %v1718 = vpow.pop %v1717
        %v1719 = vmul.f32 %v1616, 1.442695
        %v1720 = vpow.pop %v1719
        %v1721 = vmul.f32 %v1617, 1.442695
        %v1722 = vpow.pop %v1721
        %v1723 = vmul.f32 %v1618, 1.442695
        %v1724 = vpow.pop %v1723
        %v1725 = vmul.f32 %v1619, 1.442695
        %v1726 = vpow.pop %v1725
        %v1727 = vmul.f32 %v1620, 1.442695
        %v1728 = vpow.pop %v1727
        %v1729 = vmul.f32 %v1621, 1.442695
        %v1730 = vpow.pop %v1729
        %v1731 = vmul.f32 %v1622, 1.442695
        %v1732 = vpow.pop %v1731
        %v1733 = vmul.f32 %v1623, 1.442695
        %v1734 = vpow.pop %v1733
        %v1735 = vmul.f32 %v1624, 1.442695
        %v1736 = vpow.pop %v1735
        %v1737 = vmul.f32 %v1625, 1.442695
        %v1738 = vpow.pop %v1737
        %v1739 = vmul.f32 %v1626, 1.442695
        %v1740 = vpow.pop %v1739
        %v1741 = vmul.f32 %v1627, 1.442695
        %v1742 = vpow.pop %v1741
        %v1743 = vmul.f32 %v1628, 1.442695
        %v1744 = vpow.pop %v1743
        %v1745 = vmul.f32 %v1629, 1.442695
        %v1746 = vpow.pop %v1745
        %v1747 = vmul.f32 %v1630, 1.442695
        %v1748 = vpow.pop %v1747
        %v1749 = vmul.f32 %v1631, 1.442695
        %v1750 = vpow.pop %v1749
        %v1751 = vmul.f32 %v1632, 1.442695
        %v1752 = vpow.pop %v1751
        %v1753 = vmul.f32 %v1633, 1.442695
        %v1754 = vpow.pop %v1753
        %v1755 = vmul.f32 %v1634, 1.442695
        %v1756 = vpow.pop %v1755
        %v1757 = vmul.f32 %v1635, 1.442695
        %v1758 = vpow.pop %v1757
        %v1759 = vmul.f32 %v1636, 1.442695
        %v1760 = vpow.pop %v1759
        %v1761 = vmul.f32 %v1637, 1.442695
        %v1762 = vpow.pop %v1761
        %v1763 = vmul.f32 %v1638, 1.442695
        %v1764 = vpow.pop %v1763
        %v1765 = vmul.f32 %v1639, 1.442695
        %v1766 = vpow.pop %v1765
        %v1767 = vmul.f32 %v1640, 1.442695
        %v1768 = vpow.pop %v1767
        %1769 = vadd.xlane.f32.xlu0 %v1642
        %v1770 = vpop.xlane.xlu0 %1769
        %1771 = vadd.xlane.f32.xlu0 %v1644
        %v1772 = vpop.xlane.xlu0 %1771
        %1773 = vadd.xlane.f32.xlu0 %v1646
        %v1774 = vpop.xlane.xlu0 %1773
        %1775 = vadd.xlane.f32.xlu0 %v1648
        %v1776 = vpop.xlane.xlu0 %1775
        %1777 = vadd.xlane.f32.xlu0 %v1650
        %v1778 = vpop.xlane.xlu0 %1777
        %1779 = vadd.xlane.f32.xlu0 %v1652
        %v1780 = vpop.xlane.xlu0 %1779
        %1781 = vadd.xlane.f32.xlu0 %v1654
        %v1782 = vpop.xlane.xlu0 %1781
        %1783 = vadd.xlane.f32.xlu0 %v1656
        %v1784 = vpop.xlane.xlu0 %1783
        %1785 = vadd.xlane.f32.xlu0 %v1658
        %v1786 = vpop.xlane.xlu0 %1785
        %1787 = vadd.xlane.f32.xlu0 %v1660
        %v1788 = vpop.xlane.xlu0 %1787
        %1789 = vadd.xlane.f32.xlu0 %v1662
        %v1790 = vpop.xlane.xlu0 %1789
        %1791 = vadd.xlane.f32.xlu0 %v1664
        %v1792 = vpop.xlane.xlu0 %1791
        %1793 = vadd.xlane.f32.xlu0 %v1666
        %v1794 = vpop.xlane.xlu0 %1793
        %1795 = vadd.xlane.f32.xlu0 %v1668
        %v1796 = vpop.xlane.xlu0 %1795
        %1797 = vadd.xlane.f32.xlu0 %v1670
        %v1798 = vpop.xlane.xlu0 %1797
        %1799 = vadd.xlane.f32.xlu0 %v1672
        %v1800 = vpop.xlane.xlu0 %1799
        %1801 = vadd.xlane.f32.xlu0 %v1674
        %v1802 = vpop.xlane.xlu0 %1801
        %1803 = vadd.xlane.f32.xlu0 %v1676
        %v1804 = vpop.xlane.xlu0 %1803
        %1805 = vadd.xlane.f32.xlu0 %v1678
        %v1806 = vpop.xlane.xlu0 %1805
        %1807 = vadd.xlane.f32.xlu0 %v1680
        %v1808 = vpop.xlane.xlu0 %1807
        %1809 = vadd.xlane.f32.xlu0 %v1682
        %v1810 = vpop.xlane.xlu0 %1809
        %1811 = vadd.xlane.f32.xlu0 %v1684
        %v1812 = vpop.xlane.xlu0 %1811
        %1813 = vadd.xlane.f32.xlu0 %v1686
        %v1814 = vpop.xlane.xlu0 %1813
        %1815 = vadd.xlane.f32.xlu0 %v1688
        %v1816 = vpop.xlane.xlu0 %1815
        %1817 = vadd.xlane.f32.xlu0 %v1690
        %v1818 = vpop.xlane.xlu0 %1817
        %1819 = vadd.xlane.f32.xlu0 %v1692
        %v1820 = vpop.xlane.xlu0 %1819
        %1821 = vadd.xlane.f32.xlu0 %v1694
        %v1822 = vpop.xlane.xlu0 %1821
        %1823 = vadd.xlane.f32.xlu0 %v1696
        %v1824 = vpop.xlane.xlu0 %1823
        %1825 = vadd.xlane.f32.xlu0 %v1698
        %v1826 = vpop.xlane.xlu0 %1825
        %1827 = vadd.xlane.f32.xlu0 %v1700
        %v1828 = vpop.xlane.xlu0 %1827
        %1829 = vadd.xlane.f32.xlu0 %v1702
        %v1830 = vpop.xlane.xlu0 %1829
        %1831 = vadd.xlane.f32.xlu0 %v1704
        %v1832 = vpop.xlane.xlu0 %1831
        %1833 = vadd.xlane.f32.xlu0 %v1706
        %v1834 = vpop.xlane.xlu0 %1833
        %1835 = vadd.xlane.f32.xlu0 %v1708
        %v1836 = vpop.xlane.xlu0 %1835
        %1837 = vadd.xlane.f32.xlu0 %v1710
        %v1838 = vpop.xlane.xlu0 %1837
        %1839 = vadd.xlane.f32.xlu0 %v1712
        %v1840 = vpop.xlane.xlu0 %1839
        %1841 = vadd.xlane.f32.xlu0 %v1714
        %v1842 = vpop.xlane.xlu0 %1841
        %1843 = vadd.xlane.f32.xlu0 %v1716
        %v1844 = vpop.xlane.xlu0 %1843
        %1845 = vadd.xlane.f32.xlu0 %v1718
        %v1846 = vpop.xlane.xlu0 %1845
        %1847 = vadd.xlane.f32.xlu0 %v1720
        %v1848 = vpop.xlane.xlu0 %1847
        %1849 = vadd.xlane.f32.xlu0 %v1722
        %v1850 = vpop.xlane.xlu0 %1849
        %1851 = vadd.xlane.f32.xlu0 %v1724
        %v1852 = vpop.xlane.xlu0 %1851
        %1853 = vadd.xlane.f32.xlu0 %v1726
        %v1854 = vpop.xlane.xlu0 %1853
        %1855 = vadd.xlane.f32.xlu0 %v1728
        %v1856 = vpop.xlane.xlu0 %1855
        %1857 = vadd.xlane.f32.xlu0 %v1730
        %v1858 = vpop.xlane.xlu0 %1857
        %1859 = vadd.xlane.f32.xlu0 %v1732
        %v1860 = vpop.xlane.xlu0 %1859
        %1861 = vadd.xlane.f32.xlu0 %v1734
        %v1862 = vpop.xlane.xlu0 %1861
        %1863 = vadd.xlane.f32.xlu0 %v1736
        %v1864 = vpop.xlane.xlu0 %1863
        %1865 = vadd.xlane.f32.xlu0 %v1738
        %v1866 = vpop.xlane.xlu0 %1865
        %1867 = vadd.xlane.f32.xlu0 %v1740
        %v1868 = vpop.xlane.xlu0 %1867
        %1869 = vadd.xlane.f32.xlu0 %v1742
        %v1870 = vpop.xlane.xlu0 %1869
        %1871 = vadd.xlane.f32.xlu0 %v1744
        %v1872 = vpop.xlane.xlu0 %1871
        %1873 = vadd.xlane.f32.xlu0 %v1746
        %v1874 = vpop.xlane.xlu0 %1873
        %1875 = vadd.xlane.f32.xlu0 %v1748
        %v1876 = vpop.xlane.xlu0 %1875
        %1877 = vadd.xlane.f32.xlu0 %v1750
        %v1878 = vpop.xlane.xlu0 %1877
        %1879 = vadd.xlane.f32.xlu0 %v1752
        %v1880 = vpop.xlane.xlu0 %1879
        %1881 = vadd.xlane.f32.xlu0 %v1754
        %v1882 = vpop.xlane.xlu0 %1881
        %1883 = vadd.xlane.f32.xlu0 %v1756
        %v1884 = vpop.xlane.xlu0 %1883
        %1885 = vadd.xlane.f32.xlu0 %v1758
        %v1886 = vpop.xlane.xlu0 %1885
        %1887 = vadd.xlane.f32.xlu0 %v1760
        %v1888 = vpop.xlane.xlu0 %1887
        %1889 = vadd.xlane.f32.xlu0 %v1762
        %v1890 = vpop.xlane.xlu0 %1889
        %1891 = vadd.xlane.f32.xlu0 %v1764
        %v1892 = vpop.xlane.xlu0 %1891
        %1893 = vadd.xlane.f32.xlu0 %v1766
        %v1894 = vpop.xlane.xlu0 %1893
        %1895 = vadd.xlane.f32.xlu0 %v1768
        %v1896 = vpop.xlane.xlu0 %1895
        %v1897 = vrcp.pop %v1770
        %v1898 = vrcp.pop %v1772
        %v1899 = vrcp.pop %v1774
        %v1900 = vrcp.pop %v1776
        %v1901 = vrcp.pop %v1778
        %v1902 = vrcp.pop %v1780
        %v1903 = vrcp.pop %v1782
        %v1904 = vrcp.pop %v1784
        %v1905 = vrcp.pop %v1786
        %v1906 = vrcp.pop %v1788
        %v1907 = vrcp.pop %v1790
        %v1908 = vrcp.pop %v1792
        %v1909 = vrcp.pop %v1794
        %v1910 = vrcp.pop %v1796
        %v1911 = vrcp.pop %v1798
        %v1912 = vrcp.pop %v1800
        %v1913 = vrcp.pop %v1802
        %v1914 = vrcp.pop %v1804
        %v1915 = vrcp.pop %v1806
        %v1916 = vrcp.pop %v1808
        %v1917 = vrcp.pop %v1810
        %v1918 = vrcp.pop %v1812
        %v1919 = vrcp.pop %v1814
        %v1920 = vrcp.pop %v1816
        %v1921 = vrcp.pop %v1818
        %v1922 = vrcp.pop %v1820
        %v1923 = vrcp.pop %v1822
        %v1924 = vrcp.pop %v1824
        %v1925 = vrcp.pop %v1826
        %v1926 = vrcp.pop %v1828
        %v1927 = vrcp.pop %v1830
        %v1928 = vrcp.pop %v1832
        %v1929 = vrcp.pop %v1834
        %v1930 = vrcp.pop %v1836
        %v1931 = vrcp.pop %v1838
        %v1932 = vrcp.pop %v1840
        %v1933 = vrcp.pop %v1842
        %v1934 = vrcp.pop %v1844
        %v1935 = vrcp.pop %v1846
        %v1936 = vrcp.pop %v1848
        %v1937 = vrcp.pop %v1850
        %v1938 = vrcp.pop %v1852
        %v1939 = vrcp.pop %v1854
        %v1940 = vrcp.pop %v1856
        %v1941 = vrcp.pop %v1858
        %v1942 = vrcp.pop %v1860
        %v1943 = vrcp.pop %v1862
        %v1944 = vrcp.pop %v1864
        %v1945 = vrcp.pop %v1866
        %v1946 = vrcp.pop %v1868
        %v1947 = vrcp.pop %v1870
        %v1948 = vrcp.pop %v1872
        %v1949 = vrcp.pop %v1874
        %v1950 = vrcp.pop %v1876
        %v1951 = vrcp.pop %v1878
        %v1952 = vrcp.pop %v1880
        %v1953 = vrcp.pop %v1882
        %v1954 = vrcp.pop %v1884
        %v1955 = vrcp.pop %v1886
        %v1956 = vrcp.pop %v1888
        %v1957 = vrcp.pop %v1890
        %v1958 = vrcp.pop %v1892
        %v1959 = vrcp.pop %v1894
        %v1960 = vrcp.pop %v1896
        %v1961 = vmul.f32 %v1642, %v1897
        %v1962 = vmul.f32 %v1644, %v1898
        %v1963 = vmul.f32 %v1646, %v1899
        %v1964 = vmul.f32 %v1648, %v1900
        %v1965 = vmul.f32 %v1650, %v1901
        %v1966 = vmul.f32 %v1652, %v1902
        %v1967 = vmul.f32 %v1654, %v1903
        %v1968 = vmul.f32 %v1656, %v1904
        %v1969 = vmul.f32 %v1658, %v1905
        %v1970 = vmul.f32 %v1660, %v1906
        %v1971 = vmul.f32 %v1662, %v1907
        %v1972 = vmul.f32 %v1664, %v1908
        %v1973 = vmul.f32 %v1666, %v1909
        %v1974 = vmul.f32 %v1668, %v1910
        %v1975 = vmul.f32 %v1670, %v1911
        %v1976 = vmul.f32 %v1672, %v1912
        %v1977 = vmul.f32 %v1674, %v1913
        %v1978 = vmul.f32 %v1676, %v1914
        %v1979 = vmul.f32 %v1678, %v1915
        %v1980 = vmul.f32 %v1680, %v1916
        %v1981 = vmul.f32 %v1682, %v1917
        %v1982 = vmul.f32 %v1684, %v1918
        %v1983 = vmul.f32 %v1686, %v1919
        %v1984 = vmul.f32 %v1688, %v1920
        %v1985 = vmul.f32 %v1690, %v1921
        %v1986 = vmul.f32 %v1692, %v1922
        %v1987 = vmul.f32 %v1694, %v1923
        %v1988 = vmul.f32 %v1696, %v1924
        %v1989 = vmul.f32 %v1698, %v1925
        %v1990 = vmul.f32 %v1700, %v1926
        %v1991 = vmul.f32 %v1702, %v1927
        %v1992 = vmul.f32 %v1704, %v1928
        %v1993 = vmul.f32 %v1706, %v1929
        %v1994 = vmul.f32 %v1708, %v1930
        %v1995 = vmul.f32 %v1710, %v1931
        %v1996 = vmul.f32 %v1712, %v1932
        %v1997 = vmul.f32 %v1714, %v1933
        %v1998 = vmul.f32 %v1716, %v1934
        %v1999 = vmul.f32 %v1718, %v1935
        %v2000 = vmul.f32 %v1720, %v1936
        %v2001 = vmul.f32 %v1722, %v1937
        %v2002 = vmul.f32 %v1724, %v1938
        %v2003 = vmul.f32 %v1726, %v1939
        %v2004 = vmul.f32 %v1728, %v1940
        %v2005 = vmul.f32 %v1730, %v1941
        %v2006 = vmul.f32 %v1732, %v1942
        %v2007 = vmul.f32 %v1734, %v1943
        %v2008 = vmul.f32 %v1736, %v1944
        %v2009 = vmul.f32 %v1738, %v1945
        %v2010 = vmul.f32 %v1740, %v1946
        %v2011 = vmul.f32 %v1742, %v1947
        %v2012 = vmul.f32 %v1744, %v1948
        %v2013 = vmul.f32 %v1746, %v1949
        %v2014 = vmul.f32 %v1748, %v1950
        %v2015 = vmul.f32 %v1750, %v1951
        %v2016 = vmul.f32 %v1752, %v1952
        %v2017 = vmul.f32 %v1754, %v1953
        %v2018 = vmul.f32 %v1756, %v1954
        %v2019 = vmul.f32 %v1758, %v1955
        %v2020 = vmul.f32 %v1760, %v1956
        %v2021 = vmul.f32 %v1762, %v1957
        %v2022 = vmul.f32 %v1764, %v1958
        %v2023 = vmul.f32 %v1766, %v1959
        %v2024 = vmul.f32 %v1768, %v1960
        %v2025 = vpack.c.bf16 %v1962, %v1961
        %v2026 = vpack.c.bf16 %v1964, %v1963
        %v2027 = vpack.c.bf16 %v1966, %v1965
        %v2028 = vpack.c.bf16 %v1968, %v1967
        %v2029 = vpack.c.bf16 %v1970, %v1969
        %v2030 = vpack.c.bf16 %v1972, %v1971
        %v2031 = vpack.c.bf16 %v1974, %v1973
        %v2032 = vpack.c.bf16 %v1976, %v1975
        %v2033 = vpack.c.bf16 %v1978, %v1977
        %v2034 = vpack.c.bf16 %v1980, %v1979
        %v2035 = vpack.c.bf16 %v1982, %v1981
        %v2036 = vpack.c.bf16 %v1984, %v1983
        %v2037 = vpack.c.bf16 %v1986, %v1985
        %v2038 = vpack.c.bf16 %v1988, %v1987
        %v2039 = vpack.c.bf16 %v1990, %v1989
        %v2040 = vpack.c.bf16 %v1992, %v1991
        %v2041 = vpack.c.bf16 %v1994, %v1993
        %v2042 = vpack.c.bf16 %v1996, %v1995
        %v2043 = vpack.c.bf16 %v1998, %v1997
        %v2044 = vpack.c.bf16 %v2000, %v1999
        %v2045 = vpack.c.bf16 %v2002, %v2001
        %v2046 = vpack.c.bf16 %v2004, %v2003
        %v2047 = vpack.c.bf16 %v2006, %v2005
        %v2048 = vpack.c.bf16 %v2008, %v2007
        %v2049 = vpack.c.bf16 %v2010, %v2009
        %v2050 = vpack.c.bf16 %v2012, %v2011
        %v2051 = vpack.c.bf16 %v2014, %v2013
        %v2052 = vpack.c.bf16 %v2016, %v2015
        %v2053 = vpack.c.bf16 %v2018, %v2017
        %v2054 = vpack.c.bf16 %v2020, %v2019
        %v2055 = vpack.c.bf16 %v2022, %v2021
        %v2056 = vpack.c.bf16 %v2024, %v2023
        %v2089 = vunpack.c.l.b16 %v2025
        %v2090 = vunpack.c.h.b16 %v2025
        %v2091 = vunpack.c.l.b16 %v2026
        %v2092 = vunpack.c.h.b16 %v2026
        %v2093 = vunpack.c.l.b16 %v2027
        %v2094 = vunpack.c.h.b16 %v2027
        %v2095 = vunpack.c.l.b16 %v2028
        %v2096 = vunpack.c.h.b16 %v2028
        %v2097 = vunpack.c.l.b16 %v2029
        %v2098 = vunpack.c.h.b16 %v2029
        %v2099 = vunpack.c.l.b16 %v2030
        %v2100 = vunpack.c.h.b16 %v2030
        %v2101 = vunpack.c.l.b16 %v2031
        %v2102 = vunpack.c.h.b16 %v2031
        %v2103 = vunpack.c.l.b16 %v2032
        %v2104 = vunpack.c.h.b16 %v2032
        %v2105 = vunpack.c.l.b16 %v2033
        %v2106 = vunpack.c.h.b16 %v2033
        %v2107 = vunpack.c.l.b16 %v2034
        %v2108 = vunpack.c.h.b16 %v2034
        %v2109 = vunpack.c.l.b16 %v2035
        %v2110 = vunpack.c.h.b16 %v2035
        %v2111 = vunpack.c.l.b16 %v2036
        %v2112 = vunpack.c.h.b16 %v2036
        %v2113 = vunpack.c.l.b16 %v2037
        %v2114 = vunpack.c.h.b16 %v2037
        %v2115 = vunpack.c.l.b16 %v2038
        %v2116 = vunpack.c.h.b16 %v2038
        %v2117 = vunpack.c.l.b16 %v2039
        %v2118 = vunpack.c.h.b16 %v2039
        %v2119 = vunpack.c.l.b16 %v2040
        %v2120 = vunpack.c.h.b16 %v2040
        %v2121 = vunpack.c.l.b16 %v2041
        %v2122 = vunpack.c.h.b16 %v2041
        %v2123 = vunpack.c.l.b16 %v2042
        %v2124 = vunpack.c.h.b16 %v2042
        %v2125 = vunpack.c.l.b16 %v2043
        %v2126 = vunpack.c.h.b16 %v2043
        %v2127 = vunpack.c.l.b16 %v2044
        %v2128 = vunpack.c.h.b16 %v2044
        %v2129 = vunpack.c.l.b16 %v2045
        %v2130 = vunpack.c.h.b16 %v2045
        %v2131 = vunpack.c.l.b16 %v2046
        %v2132 = vunpack.c.h.b16 %v2046
        %v2133 = vunpack.c.l.b16 %v2047
        %v2134 = vunpack.c.h.b16 %v2047
        %v2135 = vunpack.c.l.b16 %v2048
        %v2136 = vunpack.c.h.b16 %v2048
        %v2137 = vunpack.c.l.b16 %v2049
        %v2138 = vunpack.c.h.b16 %v2049
        %v2139 = vunpack.c.l.b16 %v2050
        %v2140 = vunpack.c.h.b16 %v2050
        %v2141 = vunpack.c.l.b16 %v2051
        %v2142 = vunpack.c.h.b16 %v2051
        %v2143 = vunpack.c.l.b16 %v2052
        %v2144 = vunpack.c.h.b16 %v2052
        %v2145 = vunpack.c.l.b16 %v2053
        %v2146 = vunpack.c.h.b16 %v2053
        %v2147 = vunpack.c.l.b16 %v2054
        %v2148 = vunpack.c.h.b16 %v2054
        %v2149 = vunpack.c.l.b16 %v2055
        %v2150 = vunpack.c.h.b16 %v2055
        %v2151 = vunpack.c.l.b16 %v2056
        %v2152 = vunpack.c.h.b16 %v2056
        %v2153 = vpack.c.b16 %v2089, %v2089
        %v2154 = vpack.c.b16 %v2090, %v2090
        %v2155 = vpack.c.b16 %v2091, %v2091
        %v2156 = vpack.c.b16 %v2092, %v2092
        %v2157 = vpack.c.b16 %v2093, %v2093
        %v2158 = vpack.c.b16 %v2094, %v2094
        %v2159 = vpack.c.b16 %v2095, %v2095
        %v2160 = vpack.c.b16 %v2096, %v2096
        %v2161 = vpack.c.b16 %v2097, %v2097
        %v2162 = vpack.c.b16 %v2098, %v2098
        %v2163 = vpack.c.b16 %v2099, %v2099
        %v2164 = vpack.c.b16 %v2100, %v2100
        %v2165 = vpack.c.b16 %v2101, %v2101
        %v2166 = vpack.c.b16 %v2102, %v2102
        %v2167 = vpack.c.b16 %v2103, %v2103
        %v2168 = vpack.c.b16 %v2104, %v2104
        %v2169 = vpack.c.b16 %v2105, %v2105
        %v2170 = vpack.c.b16 %v2106, %v2106
        %v2171 = vpack.c.b16 %v2107, %v2107
        %v2172 = vpack.c.b16 %v2108, %v2108
        %v2173 = vpack.c.b16 %v2109, %v2109
        %v2174 = vpack.c.b16 %v2110, %v2110
        %v2175 = vpack.c.b16 %v2111, %v2111
        %v2176 = vpack.c.b16 %v2112, %v2112
        %v2177 = vpack.c.b16 %v2113, %v2113
        %v2178 = vpack.c.b16 %v2114, %v2114
        %v2179 = vpack.c.b16 %v2115, %v2115
        %v2180 = vpack.c.b16 %v2116, %v2116
        %v2181 = vpack.c.b16 %v2117, %v2117
        %v2182 = vpack.c.b16 %v2118, %v2118
        %v2183 = vpack.c.b16 %v2119, %v2119
        %v2184 = vpack.c.b16 %v2120, %v2120
        %v2185 = vpack.c.b16 %v2121, %v2121
        %v2186 = vpack.c.b16 %v2122, %v2122
        %v2187 = vpack.c.b16 %v2123, %v2123
        %v2188 = vpack.c.b16 %v2124, %v2124
        %v2189 = vpack.c.b16 %v2125, %v2125
        %v2190 = vpack.c.b16 %v2126, %v2126
        %v2191 = vpack.c.b16 %v2127, %v2127
        %v2192 = vpack.c.b16 %v2128, %v2128
        %v2193 = vpack.c.b16 %v2129, %v2129
        %v2194 = vpack.c.b16 %v2130, %v2130
        %v2195 = vpack.c.b16 %v2131, %v2131
        %v2196 = vpack.c.b16 %v2132, %v2132
        %v2197 = vpack.c.b16 %v2133, %v2133
        %v2198 = vpack.c.b16 %v2134, %v2134
        %v2199 = vpack.c.b16 %v2135, %v2135
        %v2200 = vpack.c.b16 %v2136, %v2136
        %v2201 = vpack.c.b16 %v2137, %v2137
        %v2202 = vpack.c.b16 %v2138, %v2138
        %v2203 = vpack.c.b16 %v2139, %v2139
        %v2204 = vpack.c.b16 %v2140, %v2140
        %v2205 = vpack.c.b16 %v2141, %v2141
        %v2206 = vpack.c.b16 %v2142, %v2142
        %v2207 = vpack.c.b16 %v2143, %v2143
        %v2208 = vpack.c.b16 %v2144, %v2144
        %v2209 = vpack.c.b16 %v2145, %v2145
        %v2210 = vpack.c.b16 %v2146, %v2146
        %v2211 = vpack.c.b16 %v2147, %v2147
        %v2212 = vpack.c.b16 %v2148, %v2148
        %v2213 = vpack.c.b16 %v2149, %v2149
        %v2214 = vpack.c.b16 %v2150, %v2150
        %v2215 = vpack.c.b16 %v2151, %v2151
        %v2216 = vpack.c.b16 %v2152, %v2152
        %2281 = vst [vmem:[%s248] sm:$0xf] %v2153
        %2282 = vst [vmem:[%s248 + $0x4] sm:$0xf] %v2154
        %2283 = vst [vmem:[%s248 + $0x8] sm:$0xf] %v2155
        %2284 = vst [vmem:[%s248 + $0xc] sm:$0xf] %v2156
        %2285 = vst [vmem:[%s248 + $0x10] sm:$0xf] %v2157
        %2286 = vst [vmem:[%s248 + $0x14] sm:$0xf] %v2158
        %2287 = vst [vmem:[%s248 + $0x18] sm:$0xf] %v2159
        %2288 = vst [vmem:[%s248 + $0x1c] sm:$0xf] %v2160
        %2289 = vst [vmem:[%s248 + $0x20] sm:$0xf] %v2161
        %2290 = vst [vmem:[%s248 + $0x24] sm:$0xf] %v2162
        %2291 = vst [vmem:[%s248 + $0x28] sm:$0xf] %v2163
        %2292 = vst [vmem:[%s248 + $0x2c] sm:$0xf] %v2164
        %2293 = vst [vmem:[%s248 + $0x30] sm:$0xf] %v2165
        %2294 = vst [vmem:[%s248 + $0x34] sm:$0xf] %v2166
        %2295 = vst [vmem:[%s248 + $0x38] sm:$0xf] %v2167
        %2296 = vst [vmem:[%s248 + $0x3c] sm:$0xf] %v2168
        %2297 = vst [vmem:[%s248 + $0x40] sm:$0xf] %v2169
        %2298 = vst [vmem:[%s248 + $0x44] sm:$0xf] %v2170
        %2299 = vst [vmem:[%s248 + $0x48] sm:$0xf] %v2171
        %2300 = vst [vmem:[%s248 + $0x4c] sm:$0xf] %v2172
        %2301 = vst [vmem:[%s248 + $0x50] sm:$0xf] %v2173
        %2302 = vst [vmem:[%s248 + $0x54] sm:$0xf] %v2174
        %2303 = vst [vmem:[%s248 + $0x58] sm:$0xf] %v2175
        %2304 = vst [vmem:[%s248 + $0x5c] sm:$0xf] %v2176
        %2305 = vst [vmem:[%s248 + $0x60] sm:$0xf] %v2177
        %2306 = vst [vmem:[%s248 + $0x64] sm:$0xf] %v2178
        %2307 = vst [vmem:[%s248 + $0x68] sm:$0xf] %v2179
        %2308 = vst [vmem:[%s248 + $0x6c] sm:$0xf] %v2180
        %2309 = vst [vmem:[%s248 + $0x70] sm:$0xf] %v2181
        %2310 = vst [vmem:[%s248 + $0x74] sm:$0xf] %v2182
        %2311 = vst [vmem:[%s248 + $0x78] sm:$0xf] %v2183
        %2312 = vst [vmem:[%s248 + $0x7c] sm:$0xf] %v2184
        %2313 = vst [vmem:[%s248 + $0x80] sm:$0xf] %v2185
        %2314 = vst [vmem:[%s248 + $0x84] sm:$0xf] %v2186
        %2315 = vst [vmem:[%s248 + $0x88] sm:$0xf] %v2187
        %2316 = vst [vmem:[%s248 + $0x8c] sm:$0xf] %v2188
        %2317 = vst [vmem:[%s248 + $0x90] sm:$0xf] %v2189
        %2318 = vst [vmem:[%s248 + $0x94] sm:$0xf] %v2190
        %2319 = vst [vmem:[%s248 + $0x98] sm:$0xf] %v2191
        %2320 = vst [vmem:[%s248 + $0x9c] sm:$0xf] %v2192
        %2321 = vst [vmem:[%s248 + $0xa0] sm:$0xf] %v2193
        %2322 = vst [vmem:[%s248 + $0xa4] sm:$0xf] %v2194
        %2323 = vst [vmem:[%s248 + $0xa8] sm:$0xf] %v2195
        %2324 = vst [vmem:[%s248 + $0xac] sm:$0xf] %v2196
        %2325 = vst [vmem:[%s248 + $0xb0] sm:$0xf] %v2197
        %2326 = vst [vmem:[%s248 + $0xb4] sm:$0xf] %v2198
        %2327 = vst [vmem:[%s248 + $0xb8] sm:$0xf] %v2199
        %2328 = vst [vmem:[%s248 + $0xbc] sm:$0xf] %v2200
        %2329 = vst [vmem:[%s248 + $0xc0] sm:$0xf] %v2201
        %2330 = vst [vmem:[%s248 + $0xc4] sm:$0xf] %v2202
        %2331 = vst [vmem:[%s248 + $0xc8] sm:$0xf] %v2203
        %2332 = vst [vmem:[%s248 + $0xcc] sm:$0xf] %v2204
        %2333 = vst [vmem:[%s248 + $0xd0] sm:$0xf] %v2205
        %2334 = vst [vmem:[%s248 + $0xd4] sm:$0xf] %v2206
        %2335 = vst [vmem:[%s248 + $0xd8] sm:$0xf] %v2207
        %2336 = vst [vmem:[%s248 + $0xdc] sm:$0xf] %v2208
        %2337 = vst [vmem:[%s248 + $0xe0] sm:$0xf] %v2209
        %2338 = vst [vmem:[%s248 + $0xe4] sm:$0xf] %v2210
        %2339 = vst [vmem:[%s248 + $0xe8] sm:$0xf] %v2211
        %2340 = vst [vmem:[%s248 + $0xec] sm:$0xf] %v2212
        %2341 = vst [vmem:[%s248 + $0xf0] sm:$0xf] %v2213
        %2342 = vst [vmem:[%s248 + $0xf4] sm:$0xf] %v2214
        %2343 = vst [vmem:[%s248 + $0xf8] sm:$0xf] %v2215
        %2344 = vst [vmem:[%s248 + $0xfc] sm:$0xf] %v2216
        %v2345 = vunpack.c.l.b16 %v324
        %v2346 = vunpack.c.l.b16 %v325
        %v2347 = vunpack.c.l.b16 %v326
        %v2348 = vunpack.c.l.b16 %v327
        %v2349 = vunpack.c.l.b16 %v328
        %v2350 = vunpack.c.l.b16 %v329
        %v2351 = vunpack.c.l.b16 %v330
        %v2352 = vunpack.c.l.b16 %v331
        %v2353 = vunpack.c.l.b16 %v332
        %v2354 = vunpack.c.l.b16 %v333
        %v2355 = vunpack.c.l.b16 %v334
        %v2356 = vunpack.c.l.b16 %v335
        %v2357 = vunpack.c.l.b16 %v336
        %v2358 = vunpack.c.l.b16 %v337
        %v2359 = vunpack.c.l.b16 %v338
        %v2360 = vunpack.c.l.b16 %v339
        %v2361 = vpack.c.b16 %v2346, %v2345
        %v2362 = vpack.c.b16 %v2348, %v2347
        %v2363 = vpack.c.b16 %v2350, %v2349
        %v2364 = vpack.c.b16 %v2352, %v2351
        %v2365 = vpack.c.b16 %v2354, %v2353
        %v2366 = vpack.c.b16 %v2356, %v2355
        %v2367 = vpack.c.b16 %v2358, %v2357
        %v2368 = vpack.c.b16 %v2360, %v2359
        %2377 = vmatprep.subr.bf16.mxu0 0
        %2378 = vmatpush1.bf16.msra.mxu0 %v2368
        %2379 = vmatprep.subr.bf16.mxu0 0
        %2380 = vmatpush1.bf16.msra.mxu0 %v2367
        %2381 = vmatprep.subr.bf16.mxu0 0
        %2382 = vmatpush1.bf16.msra.mxu0 %v2366
        %2383 = vmatprep.subr.bf16.mxu0 0
        %2384 = vmatpush1.bf16.msra.mxu0 %v2365
        %2385 = vmatprep.subr.bf16.mxu0 0
        %2386 = vmatpush1.bf16.msra.mxu0 %v2364
        %2387 = vmatprep.subr.bf16.mxu0 0
        %2388 = vmatpush1.bf16.msra.mxu0 %v2363
        %2389 = vmatprep.subr.bf16.mxu0 0
        %2390 = vmatpush1.bf16.msra.mxu0 %v2362
        %2391 = vmatprep.subr.bf16.mxu0 0
        %2392 = vmatpush1.bf16.msra.mxu0 %v2361
        %2393 = vmatprep.subr.bf16.mxu0 0
        %2394 = vmatpush2.bf16.msra.mxu0 0
        %2395 = vmatprep.subr.bf16.mxu0 0
        %2396 = vmatpush2.bf16.msra.mxu0 0
        %2397 = vmatprep.subr.bf16.mxu0 0
        %2398 = vmatpush2.bf16.msra.mxu0 0
        %2399 = vmatprep.subr.bf16.mxu0 0
        %2400 = vmatpush2.bf16.msra.mxu0 0
        %2401 = vmatprep.subr.bf16.mxu0 0
        %2402 = vmatpush2.bf16.msra.mxu0 0
        %2403 = vmatprep.subr.bf16.mxu0 0
        %2404 = vmatpush2.bf16.msra.mxu0 0
        %2405 = vmatprep.subr.bf16.mxu0 0
        %2406 = vmatpush2.bf16.msra.mxu0 0
        %2407 = vmatprep.subr.bf16.mxu0 0
        %2408 = vmatpush2.bf16.msra.mxu0 0
        %2409 = vmatprep.mubr.bf16.mxu0 0
        %2410 = vmatmul.mubr.bf16.gmra.mxu0 %v2025
        %v2411 = vpop.f32.mrf.mxu0
        %v2412 = vadd.f32 0.0, %v2411
        %v2413 = vpop.f32.mrf.mxu0
        %v2414 = vpop.f32.mrf.mxu0
        %v2415 = vadd.f32 0.0, %v2414
        %v2416 = vpop.f32.mrf.mxu0
        %2417 = vmatprep.mubr.bf16.mxu0 0
        %2418 = vmatmul.mubr.bf16.gmra.mxu0 %v2026
        %v2419 = vpop.f32.mrf.mxu0
        %v2420 = vadd.f32 0.0, %v2419
        %v2421 = vpop.f32.mrf.mxu0
        %v2422 = vpop.f32.mrf.mxu0
        %v2423 = vadd.f32 0.0, %v2422
        %v2424 = vpop.f32.mrf.mxu0
        %2425 = vmatprep.mubr.bf16.mxu0 0
        %2426 = vmatmul.mubr.bf16.gmra.mxu0 %v2027
        %v2427 = vpop.f32.mrf.mxu0
        %v2428 = vadd.f32 0.0, %v2427
        %v2429 = vpop.f32.mrf.mxu0
        %v2430 = vpop.f32.mrf.mxu0
        %v2431 = vadd.f32 0.0, %v2430
        %v2432 = vpop.f32.mrf.mxu0
        %2433 = vmatprep.mubr.bf16.mxu0 0
        %2434 = vmatmul.mubr.bf16.gmra.mxu0 %v2028
        %v2435 = vpop.f32.mrf.mxu0
        %v2436 = vadd.f32 0.0, %v2435
        %v2437 = vpop.f32.mrf.mxu0
        %v2438 = vpop.f32.mrf.mxu0
        %v2439 = vadd.f32 0.0, %v2438
        %v2440 = vpop.f32.mrf.mxu0
        %2441 = vmatprep.mubr.bf16.mxu0 0
        %2442 = vmatmul.mubr.bf16.gmra.mxu0 %v2029
        %v2443 = vpop.f32.mrf.mxu0
        %v2444 = vadd.f32 0.0, %v2443
        %v2445 = vpop.f32.mrf.mxu0
        %v2446 = vpop.f32.mrf.mxu0
        %v2447 = vadd.f32 0.0, %v2446
        %v2448 = vpop.f32.mrf.mxu0
        %2449 = vmatprep.mubr.bf16.mxu0 0
        %2450 = vmatmul.mubr.bf16.gmra.mxu0 %v2030
        %v2451 = vpop.f32.mrf.mxu0
        %v2452 = vadd.f32 0.0, %v2451
        %v2453 = vpop.f32.mrf.mxu0
        %v2454 = vpop.f32.mrf.mxu0
        %v2455 = vadd.f32 0.0, %v2454
        %v2456 = vpop.f32.mrf.mxu0
        %2457 = vmatprep.mubr.bf16.mxu0 0
        %2458 = vmatmul.mubr.bf16.gmra.mxu0 %v2031
        %v2459 = vpop.f32.mrf.mxu0
        %v2460 = vadd.f32 0.0, %v2459
        %v2461 = vpop.f32.mrf.mxu0
        %v2462 = vpop.f32.mrf.mxu0
        %v2463 = vadd.f32 0.0, %v2462
        %v2464 = vpop.f32.mrf.mxu0
        %2465 = vmatprep.mubr.bf16.mxu0 0
        %2466 = vmatmul.mubr.bf16.gmra.mxu0 %v2032
        %v2467 = vpop.f32.mrf.mxu0
        %v2468 = vadd.f32 0.0, %v2467
        %v2469 = vpop.f32.mrf.mxu0
        %v2470 = vpop.f32.mrf.mxu0
        %v2471 = vadd.f32 0.0, %v2470
        %v2472 = vpop.f32.mrf.mxu0
        %2473 = vdwg.mxu0
        %v2474 = vunpack.c.l.b16 %v581
        %v2475 = vunpack.c.l.b16 %v583
        %v2476 = vunpack.c.l.b16 %v585
        %v2477 = vunpack.c.l.b16 %v587
        %v2478 = vunpack.c.l.b16 %v589
        %v2479 = vunpack.c.l.b16 %v591
        %v2480 = vunpack.c.l.b16 %v593
        %v2481 = vunpack.c.l.b16 %v595
        %v2482 = vunpack.c.l.b16 %v597
        %v2483 = vunpack.c.l.b16 %v599
        %v2484 = vunpack.c.l.b16 %v601
        %v2485 = vunpack.c.l.b16 %v603
        %v2486 = vunpack.c.l.b16 %v605
        %v2487 = vunpack.c.l.b16 %v607
        %v2488 = vunpack.c.l.b16 %v609
        %v2489 = vunpack.c.l.b16 %v611
        %v2490 = vpack.c.b16 %v2475, %v2474
        %v2491 = vpack.c.b16 %v2477, %v2476
        %v2492 = vpack.c.b16 %v2479, %v2478
        %v2493 = vpack.c.b16 %v2481, %v2480
        %v2494 = vpack.c.b16 %v2483, %v2482
        %v2495 = vpack.c.b16 %v2485, %v2484
        %v2496 = vpack.c.b16 %v2487, %v2486
        %v2497 = vpack.c.b16 %v2489, %v2488
        %2506 = vmatprep.subr.bf16.mxu0 0
        %2507 = vmatpush1.bf16.msra.mxu0 %v2497
        %2508 = vmatprep.subr.bf16.mxu0 0
        %2509 = vmatpush1.bf16.msra.mxu0 %v2496
        %2510 = vmatprep.subr.bf16.mxu0 0
        %2511 = vmatpush1.bf16.msra.mxu0 %v2495
        %2512 = vmatprep.subr.bf16.mxu0 0
        %2513 = vmatpush1.bf16.msra.mxu0 %v2494
        %2514 = vmatprep.subr.bf16.mxu0 0
        %2515 = vmatpush1.bf16.msra.mxu0 %v2493
        %2516 = vmatprep.subr.bf16.mxu0 0
        %2517 = vmatpush1.bf16.msra.mxu0 %v2492
        %2518 = vmatprep.subr.bf16.mxu0 0
        %2519 = vmatpush1.bf16.msra.mxu0 %v2491
        %2520 = vmatprep.subr.bf16.mxu0 0
        %2521 = vmatpush1.bf16.msra.mxu0 %v2490
        %2522 = vmatprep.subr.bf16.mxu0 0
        %2523 = vmatpush2.bf16.msra.mxu0 0
        %2524 = vmatprep.subr.bf16.mxu0 0
        %2525 = vmatpush2.bf16.msra.mxu0 0
        %2526 = vmatprep.subr.bf16.mxu0 0
        %2527 = vmatpush2.bf16.msra.mxu0 0
        %2528 = vmatprep.subr.bf16.mxu0 0
        %2529 = vmatpush2.bf16.msra.mxu0 0
        %2530 = vmatprep.subr.bf16.mxu0 0
        %2531 = vmatpush2.bf16.msra.mxu0 0
        %2532 = vmatprep.subr.bf16.mxu0 0
        %2533 = vmatpush2.bf16.msra.mxu0 0
        %2534 = vmatprep.subr.bf16.mxu0 0
        %2535 = vmatpush2.bf16.msra.mxu0 0
        %2536 = vmatprep.subr.bf16.mxu0 0
        %2537 = vmatpush2.bf16.msra.mxu0 0
        %2538 = vmatprep.mubr.bf16.mxu0 0
        %2539 = vmatmul.mubr.bf16.gmra.mxu0 %v2033
        %v2540 = vpop.f32.mrf.mxu0
        %v2541 = vadd.f32 0.0, %v2540
        %v2542 = vpop.f32.mrf.mxu0
        %v2543 = vpop.f32.mrf.mxu0
        %v2544 = vadd.f32 0.0, %v2543
        %v2545 = vpop.f32.mrf.mxu0
        %2546 = vmatprep.mubr.bf16.mxu0 0
        %2547 = vmatmul.mubr.bf16.gmra.mxu0 %v2034
        %v2548 = vpop.f32.mrf.mxu0
        %v2549 = vadd.f32 0.0, %v2548
        %v2550 = vpop.f32.mrf.mxu0
        %v2551 = vpop.f32.mrf.mxu0
        %v2552 = vadd.f32 0.0, %v2551
        %v2553 = vpop.f32.mrf.mxu0
        %2554 = vmatprep.mubr.bf16.mxu0 0
        %2555 = vmatmul.mubr.bf16.gmra.mxu0 %v2035
        %v2556 = vpop.f32.mrf.mxu0
        %v2557 = vadd.f32 0.0, %v2556
        %v2558 = vpop.f32.mrf.mxu0
        %v2559 = vpop.f32.mrf.mxu0
        %v2560 = vadd.f32 0.0, %v2559
        %v2561 = vpop.f32.mrf.mxu0
        %2562 = vmatprep.mubr.bf16.mxu0 0
        %2563 = vmatmul.mubr.bf16.gmra.mxu0 %v2036
        %v2564 = vpop.f32.mrf.mxu0
        %v2565 = vadd.f32 0.0, %v2564
        %v2566 = vpop.f32.mrf.mxu0
        %v2567 = vpop.f32.mrf.mxu0
        %v2568 = vadd.f32 0.0, %v2567
        %v2569 = vpop.f32.mrf.mxu0
        %2570 = vmatprep.mubr.bf16.mxu0 0
        %2571 = vmatmul.mubr.bf16.gmra.mxu0 %v2037
        %v2572 = vpop.f32.mrf.mxu0
        %v2573 = vadd.f32 0.0, %v2572
        %v2574 = vpop.f32.mrf.mxu0
        %v2575 = vpop.f32.mrf.mxu0
        %v2576 = vadd.f32 0.0, %v2575
        %v2577 = vpop.f32.mrf.mxu0
        %2578 = vmatprep.mubr.bf16.mxu0 0
        %2579 = vmatmul.mubr.bf16.gmra.mxu0 %v2038
        %v2580 = vpop.f32.mrf.mxu0
        %v2581 = vadd.f32 0.0, %v2580
        %v2582 = vpop.f32.mrf.mxu0
        %v2583 = vpop.f32.mrf.mxu0
        %v2584 = vadd.f32 0.0, %v2583
        %v2585 = vpop.f32.mrf.mxu0
        %2586 = vmatprep.mubr.bf16.mxu0 0
        %2587 = vmatmul.mubr.bf16.gmra.mxu0 %v2039
        %v2588 = vpop.f32.mrf.mxu0
        %v2589 = vadd.f32 0.0, %v2588
        %v2590 = vpop.f32.mrf.mxu0
        %v2591 = vpop.f32.mrf.mxu0
        %v2592 = vadd.f32 0.0, %v2591
        %v2593 = vpop.f32.mrf.mxu0
        %2594 = vmatprep.mubr.bf16.mxu0 0
        %2595 = vmatmul.mubr.bf16.gmra.mxu0 %v2040
        %v2596 = vpop.f32.mrf.mxu0
        %v2597 = vadd.f32 0.0, %v2596
        %v2598 = vpop.f32.mrf.mxu0
        %v2599 = vpop.f32.mrf.mxu0
        %v2600 = vadd.f32 0.0, %v2599
        %v2601 = vpop.f32.mrf.mxu0
        %2602 = vdwg.mxu0
        %v2603 = vunpack.c.l.b16 %v613
        %v2604 = vunpack.c.l.b16 %v615
        %v2605 = vunpack.c.l.b16 %v617
        %v2606 = vunpack.c.l.b16 %v619
        %v2607 = vunpack.c.l.b16 %v621
        %v2608 = vunpack.c.l.b16 %v623
        %v2609 = vunpack.c.l.b16 %v625
        %v2610 = vunpack.c.l.b16 %v627
        %v2611 = vunpack.c.l.b16 %v629
        %v2612 = vunpack.c.l.b16 %v631
        %v2613 = vunpack.c.l.b16 %v633
        %v2614 = vunpack.c.l.b16 %v635
        %v2615 = vunpack.c.l.b16 %v637
        %v2616 = vunpack.c.l.b16 %v639
        %v2617 = vunpack.c.l.b16 %v641
        %v2618 = vunpack.c.l.b16 %v643
        %v2619 = vpack.c.b16 %v2604, %v2603
        %v2620 = vpack.c.b16 %v2606, %v2605
        %v2621 = vpack.c.b16 %v2608, %v2607
        %v2622 = vpack.c.b16 %v2610, %v2609
        %v2623 = vpack.c.b16 %v2612, %v2611
        %v2624 = vpack.c.b16 %v2614, %v2613
        %v2625 = vpack.c.b16 %v2616, %v2615
        %v2626 = vpack.c.b16 %v2618, %v2617
        %2635 = vmatprep.subr.bf16.mxu0 0
        %2636 = vmatpush1.bf16.msra.mxu0 %v2626
        %2637 = vmatprep.subr.bf16.mxu0 0
        %2638 = vmatpush1.bf16.msra.mxu0 %v2625
        %2639 = vmatprep.subr.bf16.mxu0 0
        %2640 = vmatpush1.bf16.msra.mxu0 %v2624
        %2641 = vmatprep.subr.bf16.mxu0 0
        %2642 = vmatpush1.bf16.msra.mxu0 %v2623
        %2643 = vmatprep.subr.bf16.mxu0 0
        %2644 = vmatpush1.bf16.msra.mxu0 %v2622
        %2645 = vmatprep.subr.bf16.mxu0 0
        %2646 = vmatpush1.bf16.msra.mxu0 %v2621
        %2647 = vmatprep.subr.bf16.mxu0 0
        %2648 = vmatpush1.bf16.msra.mxu0 %v2620
        %2649 = vmatprep.subr.bf16.mxu0 0
        %2650 = vmatpush1.bf16.msra.mxu0 %v2619
        %2651 = vmatprep.subr.bf16.mxu0 0
        %2652 = vmatpush2.bf16.msra.mxu0 0
        %2653 = vmatprep.subr.bf16.mxu0 0
        %2654 = vmatpush2.bf16.msra.mxu0 0
        %2655 = vmatprep.subr.bf16.mxu0 0
        %2656 = vmatpush2.bf16.msra.mxu0 0
        %2657 = vmatprep.subr.bf16.mxu0 0
        %2658 = vmatpush2.bf16.msra.mxu0 0
        %2659 = vmatprep.subr.bf16.mxu0 0
        %2660 = vmatpush2.bf16.msra.mxu0 0
        %2661 = vmatprep.subr.bf16.mxu0 0
        %2662 = vmatpush2.bf16.msra.mxu0 0
        %2663 = vmatprep.subr.bf16.mxu0 0
        %2664 = vmatpush2.bf16.msra.mxu0 0
        %2665 = vmatprep.subr.bf16.mxu0 0
        %2666 = vmatpush2.bf16.msra.mxu0 0
        %2667 = vmatprep.mubr.bf16.mxu0 0
        %2668 = vmatmul.mubr.bf16.gmra.mxu0 %v2041
        %v2669 = vpop.f32.mrf.mxu0
        %v2670 = vadd.f32 0.0, %v2669
        %v2671 = vpop.f32.mrf.mxu0
        %v2672 = vpop.f32.mrf.mxu0
        %v2673 = vadd.f32 0.0, %v2672
        %v2674 = vpop.f32.mrf.mxu0
        %2675 = vmatprep.mubr.bf16.mxu0 0
        %2676 = vmatmul.mubr.bf16.gmra.mxu0 %v2042
        %v2677 = vpop.f32.mrf.mxu0
        %v2678 = vadd.f32 0.0, %v2677
        %v2679 = vpop.f32.mrf.mxu0
        %v2680 = vpop.f32.mrf.mxu0
        %v2681 = vadd.f32 0.0, %v2680
        %v2682 = vpop.f32.mrf.mxu0
        %2683 = vmatprep.mubr.bf16.mxu0 0
        %2684 = vmatmul.mubr.bf16.gmra.mxu0 %v2043
        %v2685 = vpop.f32.mrf.mxu0
        %v2686 = vadd.f32 0.0, %v2685
        %v2687 = vpop.f32.mrf.mxu0
        %v2688 = vpop.f32.mrf.mxu0
        %v2689 = vadd.f32 0.0, %v2688
        %v2690 = vpop.f32.mrf.mxu0
        %2691 = vmatprep.mubr.bf16.mxu0 0
        %2692 = vmatmul.mubr.bf16.gmra.mxu0 %v2044
        %v2693 = vpop.f32.mrf.mxu0
        %v2694 = vadd.f32 0.0, %v2693
        %v2695 = vpop.f32.mrf.mxu0
        %v2696 = vpop.f32.mrf.mxu0
        %v2697 = vadd.f32 0.0, %v2696
        %v2698 = vpop.f32.mrf.mxu0
        %2699 = vmatprep.mubr.bf16.mxu0 0
        %2700 = vmatmul.mubr.bf16.gmra.mxu0 %v2045
        %v2701 = vpop.f32.mrf.mxu0
        %v2702 = vadd.f32 0.0, %v2701
        %v2703 = vpop.f32.mrf.mxu0
        %v2704 = vpop.f32.mrf.mxu0
        %v2705 = vadd.f32 0.0, %v2704
        %v2706 = vpop.f32.mrf.mxu0
        %2707 = vmatprep.mubr.bf16.mxu0 0
        %2708 = vmatmul.mubr.bf16.gmra.mxu0 %v2046
        %v2709 = vpop.f32.mrf.mxu0
        %v2710 = vadd.f32 0.0, %v2709
        %v2711 = vpop.f32.mrf.mxu0
        %v2712 = vpop.f32.mrf.mxu0
        %v2713 = vadd.f32 0.0, %v2712
        %v2714 = vpop.f32.mrf.mxu0
        %2715 = vmatprep.mubr.bf16.mxu0 0
        %2716 = vmatmul.mubr.bf16.gmra.mxu0 %v2047
        %v2717 = vpop.f32.mrf.mxu0
        %v2718 = vadd.f32 0.0, %v2717
        %v2719 = vpop.f32.mrf.mxu0
        %v2720 = vpop.f32.mrf.mxu0
        %v2721 = vadd.f32 0.0, %v2720
        %v2722 = vpop.f32.mrf.mxu0
        %2723 = vmatprep.mubr.bf16.mxu0 0
        %2724 = vmatmul.mubr.bf16.gmra.mxu0 %v2048
        %v2725 = vpop.f32.mrf.mxu0
        %v2726 = vadd.f32 0.0, %v2725
        %v2727 = vpop.f32.mrf.mxu0
        %v2728 = vpop.f32.mrf.mxu0
        %v2729 = vadd.f32 0.0, %v2728
        %v2730 = vpop.f32.mrf.mxu0
        %2731 = vdwg.mxu0
        %v2732 = vunpack.c.l.b16 %v645
        %v2733 = vunpack.c.l.b16 %v647
        %v2734 = vunpack.c.l.b16 %v649
        %v2735 = vunpack.c.l.b16 %v651
        %v2736 = vunpack.c.l.b16 %v653
        %v2737 = vunpack.c.l.b16 %v655
        %v2738 = vunpack.c.l.b16 %v657
        %v2739 = vunpack.c.l.b16 %v659
        %v2740 = vunpack.c.l.b16 %v661
        %v2741 = vunpack.c.l.b16 %v663
        %v2742 = vunpack.c.l.b16 %v665
        %v2743 = vunpack.c.l.b16 %v667
        %v2744 = vunpack.c.l.b16 %v669
        %v2745 = vunpack.c.l.b16 %v671
        %v2746 = vunpack.c.l.b16 %v673
        %v2747 = vunpack.c.l.b16 %v675
        %v2748 = vpack.c.b16 %v2733, %v2732
        %v2749 = vpack.c.b16 %v2735, %v2734
        %v2750 = vpack.c.b16 %v2737, %v2736
        %v2751 = vpack.c.b16 %v2739, %v2738
        %v2752 = vpack.c.b16 %v2741, %v2740
        %v2753 = vpack.c.b16 %v2743, %v2742
        %v2754 = vpack.c.b16 %v2745, %v2744
        %v2755 = vpack.c.b16 %v2747, %v2746
        %2764 = vmatprep.subr.bf16.mxu0 0
        %2765 = vmatpush1.bf16.msra.mxu0 %v2755
        %2766 = vmatprep.subr.bf16.mxu0 0
        %2767 = vmatpush1.bf16.msra.mxu0 %v2754
        %2768 = vmatprep.subr.bf16.mxu0 0
        %2769 = vmatpush1.bf16.msra.mxu0 %v2753
        %2770 = vmatprep.subr.bf16.mxu0 0
        %2771 = vmatpush1.bf16.msra.mxu0 %v2752
        %2772 = vmatprep.subr.bf16.mxu0 0
        %2773 = vmatpush1.bf16.msra.mxu0 %v2751
        %2774 = vmatprep.subr.bf16.mxu0 0
        %2775 = vmatpush1.bf16.msra.mxu0 %v2750
        %2776 = vmatprep.subr.bf16.mxu0 0
        %2777 = vmatpush1.bf16.msra.mxu0 %v2749
        %2778 = vmatprep.subr.bf16.mxu0 0
        %2779 = vmatpush1.bf16.msra.mxu0 %v2748
        %2780 = vmatprep.subr.bf16.mxu0 0
        %2781 = vmatpush2.bf16.msra.mxu0 0
        %2782 = vmatprep.subr.bf16.mxu0 0
        %2783 = vmatpush2.bf16.msra.mxu0 0
        %2784 = vmatprep.subr.bf16.mxu0 0
        %2785 = vmatpush2.bf16.msra.mxu0 0
        %2786 = vmatprep.subr.bf16.mxu0 0
        %2787 = vmatpush2.bf16.msra.mxu0 0
        %2788 = vmatprep.subr.bf16.mxu0 0
        %2789 = vmatpush2.bf16.msra.mxu0 0
        %2790 = vmatprep.subr.bf16.mxu0 0
        %2791 = vmatpush2.bf16.msra.mxu0 0
        %2792 = vmatprep.subr.bf16.mxu0 0
        %2793 = vmatpush2.bf16.msra.mxu0 0
        %2794 = vmatprep.subr.bf16.mxu0 0
        %2795 = vmatpush2.bf16.msra.mxu0 0
        %2796 = vmatprep.mubr.bf16.mxu0 0
        %2797 = vmatmul.mubr.bf16.gmra.mxu0 %v2049
        %v2798 = vpop.f32.mrf.mxu0
        %v2799 = vadd.f32 0.0, %v2798
        %v2800 = vpop.f32.mrf.mxu0
        %v2801 = vpop.f32.mrf.mxu0
        %v2802 = vadd.f32 0.0, %v2801
        %v2803 = vpop.f32.mrf.mxu0
        %2804 = vmatprep.mubr.bf16.mxu0 0
        %2805 = vmatmul.mubr.bf16.gmra.mxu0 %v2050
        %v2806 = vpop.f32.mrf.mxu0
        %v2807 = vadd.f32 0.0, %v2806
        %v2808 = vpop.f32.mrf.mxu0
        %v2809 = vpop.f32.mrf.mxu0
        %v2810 = vadd.f32 0.0, %v2809
        %v2811 = vpop.f32.mrf.mxu0
        %2812 = vmatprep.mubr.bf16.mxu0 0
        %2813 = vmatmul.mubr.bf16.gmra.mxu0 %v2051
        %v2814 = vpop.f32.mrf.mxu0
        %v2815 = vadd.f32 0.0, %v2814
        %v2816 = vpop.f32.mrf.mxu0
        %v2817 = vpop.f32.mrf.mxu0
        %v2818 = vadd.f32 0.0, %v2817
        %v2819 = vpop.f32.mrf.mxu0
        %2820 = vmatprep.mubr.bf16.mxu0 0
        %2821 = vmatmul.mubr.bf16.gmra.mxu0 %v2052
        %v2822 = vpop.f32.mrf.mxu0
        %v2823 = vadd.f32 0.0, %v2822
        %v2824 = vpop.f32.mrf.mxu0
        %v2825 = vpop.f32.mrf.mxu0
        %v2826 = vadd.f32 0.0, %v2825
        %v2827 = vpop.f32.mrf.mxu0
        %2828 = vmatprep.mubr.bf16.mxu0 0
        %2829 = vmatmul.mubr.bf16.gmra.mxu0 %v2053
        %v2830 = vpop.f32.mrf.mxu0
        %v2831 = vadd.f32 0.0, %v2830
        %v2832 = vpop.f32.mrf.mxu0
        %v2833 = vpop.f32.mrf.mxu0
        %v2834 = vadd.f32 0.0, %v2833
        %v2835 = vpop.f32.mrf.mxu0
        %2836 = vmatprep.mubr.bf16.mxu0 0
        %2837 = vmatmul.mubr.bf16.gmra.mxu0 %v2054
        %v2838 = vpop.f32.mrf.mxu0
        %v2839 = vadd.f32 0.0, %v2838
        %v2840 = vpop.f32.mrf.mxu0
        %v2841 = vpop.f32.mrf.mxu0
        %v2842 = vadd.f32 0.0, %v2841
        %v2843 = vpop.f32.mrf.mxu0
        %2844 = vmatprep.mubr.bf16.mxu0 0
        %2845 = vmatmul.mubr.bf16.gmra.mxu0 %v2055
        %v2846 = vpop.f32.mrf.mxu0
        %v2847 = vadd.f32 0.0, %v2846
        %v2848 = vpop.f32.mrf.mxu0
        %v2849 = vpop.f32.mrf.mxu0
        %v2850 = vadd.f32 0.0, %v2849
        %v2851 = vpop.f32.mrf.mxu0
        %2852 = vmatprep.mubr.bf16.mxu0 0
        %2853 = vmatmul.mubr.bf16.gmra.mxu0 %v2056
        %v2854 = vpop.f32.mrf.mxu0
        %v2855 = vadd.f32 0.0, %v2854
        %v2856 = vpop.f32.mrf.mxu0
        %v2857 = vpop.f32.mrf.mxu0
        %v2858 = vadd.f32 0.0, %v2857
        %v2859 = vpop.f32.mrf.mxu0
        %2860 = vdwg.mxu0
        %2877 = vrot.lane.b32.xlu0 %v2541, 32
        %v2878 = vpop.permute.xlu0 %2877
        %2879 = vrot.lane.b32.xlu0 %v2544, 32
        %v2880 = vpop.permute.xlu0 %2879
        %2881 = vrot.lane.b32.xlu0 %v2549, 32
        %v2882 = vpop.permute.xlu0 %2881
        %2883 = vrot.lane.b32.xlu0 %v2552, 32
        %v2884 = vpop.permute.xlu0 %2883
        %2885 = vrot.lane.b32.xlu0 %v2557, 32
        %v2886 = vpop.permute.xlu0 %2885
        %2887 = vrot.lane.b32.xlu0 %v2560, 32
        %v2888 = vpop.permute.xlu0 %2887
        %2889 = vrot.lane.b32.xlu0 %v2565, 32
        %v2890 = vpop.permute.xlu0 %2889
        %2891 = vrot.lane.b32.xlu0 %v2568, 32
        %v2892 = vpop.permute.xlu0 %2891
        %2893 = vrot.lane.b32.xlu0 %v2573, 32
        %v2894 = vpop.permute.xlu0 %2893
        %2895 = vrot.lane.b32.xlu0 %v2576, 32
        %v2896 = vpop.permute.xlu0 %2895
        %2897 = vrot.lane.b32.xlu0 %v2581, 32
        %v2898 = vpop.permute.xlu0 %2897
        %2899 = vrot.lane.b32.xlu0 %v2584, 32
        %v2900 = vpop.permute.xlu0 %2899
        %2901 = vrot.lane.b32.xlu0 %v2589, 32
        %v2902 = vpop.permute.xlu0 %2901
        %2903 = vrot.lane.b32.xlu0 %v2592, 32
        %v2904 = vpop.permute.xlu0 %2903
        %2905 = vrot.lane.b32.xlu0 %v2597, 32
        %v2906 = vpop.permute.xlu0 %2905
        %2907 = vrot.lane.b32.xlu0 %v2600, 32
        %v2908 = vpop.permute.xlu0 %2907
        %2941 = vrot.lane.b32.xlu0 %v2670, 64
        %v2942 = vpop.permute.xlu0 %2941
        %2943 = vrot.lane.b32.xlu0 %v2673, 64
        %v2944 = vpop.permute.xlu0 %2943
        %2945 = vrot.lane.b32.xlu0 %v2678, 64
        %v2946 = vpop.permute.xlu0 %2945
        %2947 = vrot.lane.b32.xlu0 %v2681, 64
        %v2948 = vpop.permute.xlu0 %2947
        %2949 = vrot.lane.b32.xlu0 %v2686, 64
        %v2950 = vpop.permute.xlu0 %2949
        %2951 = vrot.lane.b32.xlu0 %v2689, 64
        %v2952 = vpop.permute.xlu0 %2951
        %2953 = vrot.lane.b32.xlu0 %v2694, 64
        %v2954 = vpop.permute.xlu0 %2953
        %2955 = vrot.lane.b32.xlu0 %v2697, 64
        %v2956 = vpop.permute.xlu0 %2955
        %2957 = vrot.lane.b32.xlu0 %v2702, 64
        %v2958 = vpop.permute.xlu0 %2957
        %2959 = vrot.lane.b32.xlu0 %v2705, 64
        %v2960 = vpop.permute.xlu0 %2959
        %2961 = vrot.lane.b32.xlu0 %v2710, 64
        %v2962 = vpop.permute.xlu0 %2961
        %2963 = vrot.lane.b32.xlu0 %v2713, 64
        %v2964 = vpop.permute.xlu0 %2963
        %2965 = vrot.lane.b32.xlu0 %v2718, 64
        %v2966 = vpop.permute.xlu0 %2965
        %2967 = vrot.lane.b32.xlu0 %v2721, 64
        %v2968 = vpop.permute.xlu0 %2967
        %2969 = vrot.lane.b32.xlu0 %v2726, 64
        %v2970 = vpop.permute.xlu0 %2969
        %2971 = vrot.lane.b32.xlu0 %v2729, 64
        %v2972 = vpop.permute.xlu0 %2971
        %3005 = vrot.lane.b32.xlu0 %v2799, 96
        %v3006 = vpop.permute.xlu0 %3005
        %3007 = vrot.lane.b32.xlu0 %v2802, 96
        %v3008 = vpop.permute.xlu0 %3007
        %3009 = vrot.lane.b32.xlu0 %v2807, 96
        %v3010 = vpop.permute.xlu0 %3009
        %3011 = vrot.lane.b32.xlu0 %v2810, 96
        %v3012 = vpop.permute.xlu0 %3011
        %3013 = vrot.lane.b32.xlu0 %v2815, 96
        %v3014 = vpop.permute.xlu0 %3013
        %3015 = vrot.lane.b32.xlu0 %v2818, 96
        %v3016 = vpop.permute.xlu0 %3015
        %3017 = vrot.lane.b32.xlu0 %v2823, 96
        %v3018 = vpop.permute.xlu0 %3017
        %3019 = vrot.lane.b32.xlu0 %v2826, 96
        %v3020 = vpop.permute.xlu0 %3019
        %3021 = vrot.lane.b32.xlu0 %v2831, 96
        %v3022 = vpop.permute.xlu0 %3021
        %3023 = vrot.lane.b32.xlu0 %v2834, 96
        %v3024 = vpop.permute.xlu0 %3023
        %3025 = vrot.lane.b32.xlu0 %v2839, 96
        %v3026 = vpop.permute.xlu0 %3025
        %3027 = vrot.lane.b32.xlu0 %v2842, 96
        %v3028 = vpop.permute.xlu0 %3027
        %3029 = vrot.lane.b32.xlu0 %v2847, 96
        %v3030 = vpop.permute.xlu0 %3029
        %3031 = vrot.lane.b32.xlu0 %v2850, 96
        %v3032 = vpop.permute.xlu0 %3031
        %3033 = vrot.lane.b32.xlu0 %v2855, 96
        %v3034 = vpop.permute.xlu0 %3033
        %3035 = vrot.lane.b32.xlu0 %v2858, 96
        %v3036 = vpop.permute.xlu0 %3035
        %v3053 = vsel %vm724, %v2412, %v2878
        %v3054 = vsel %vm724, %v2415, %v2880
        %v3055 = vsel %vm724, %v2420, %v2882
        %v3056 = vsel %vm724, %v2423, %v2884
        %v3057 = vsel %vm724, %v2428, %v2886
        %v3058 = vsel %vm724, %v2431, %v2888
        %v3059 = vsel %vm724, %v2436, %v2890
        %v3060 = vsel %vm724, %v2439, %v2892
        %v3061 = vsel %vm724, %v2444, %v2894
        %v3062 = vsel %vm724, %v2447, %v2896
        %v3063 = vsel %vm724, %v2452, %v2898
        %v3064 = vsel %vm724, %v2455, %v2900
        %v3065 = vsel %vm724, %v2460, %v2902
        %v3066 = vsel %vm724, %v2463, %v2904
        %v3067 = vsel %vm724, %v2468, %v2906
        %v3068 = vsel %vm724, %v2471, %v2908
        %vm3069 = vcmask 523264
        %v3070 = vsel %vm3069, %v3053, %v2942
        %v3071 = vsel %vm3069, %v3054, %v2944
        %v3072 = vsel %vm3069, %v3055, %v2946
        %v3073 = vsel %vm3069, %v3056, %v2948
        %v3074 = vsel %vm3069, %v3057, %v2950
        %v3075 = vsel %vm3069, %v3058, %v2952
        %v3076 = vsel %vm3069, %v3059, %v2954
        %v3077 = vsel %vm3069, %v3060, %v2956
        %v3078 = vsel %vm3069, %v3061, %v2958
        %v3079 = vsel %vm3069, %v3062, %v2960
        %v3080 = vsel %vm3069, %v3063, %v2962
        %v3081 = vsel %vm3069, %v3064, %v2964
        %v3082 = vsel %vm3069, %v3065, %v2966
        %v3083 = vsel %vm3069, %v3066, %v2968
        %v3084 = vsel %vm3069, %v3067, %v2970
        %v3085 = vsel %vm3069, %v3068, %v2972
        %vm3086 = vcmask 785408
        %v3087 = vsel %vm3086, %v3070, %v3006
        %v3088 = vsel %vm3086, %v3071, %v3008
        %v3089 = vsel %vm3086, %v3072, %v3010
        %v3090 = vsel %vm3086, %v3073, %v3012
        %v3091 = vsel %vm3086, %v3074, %v3014
        %v3092 = vsel %vm3086, %v3075, %v3016
        %v3093 = vsel %vm3086, %v3076, %v3018
        %v3094 = vsel %vm3086, %v3077, %v3020
        %v3095 = vsel %vm3086, %v3078, %v3022
        %v3096 = vsel %vm3086, %v3079, %v3024
        %v3097 = vsel %vm3086, %v3080, %v3026
        %v3098 = vsel %vm3086, %v3081, %v3028
        %v3099 = vsel %vm3086, %v3082, %v3030
        %v3100 = vsel %vm3086, %v3083, %v3032
        %v3101 = vsel %vm3086, %v3084, %v3034
        %v3102 = vsel %vm3086, %v3085, %v3036
        %v3103 = vpack.c.bf16 %v3088, %v3087
        %v3104 = vpack.c.bf16 %v3090, %v3089
        %v3105 = vpack.c.bf16 %v3092, %v3091
        %v3106 = vpack.c.bf16 %v3094, %v3093
        %v3107 = vpack.c.bf16 %v3096, %v3095
        %v3108 = vpack.c.bf16 %v3098, %v3097
        %v3109 = vpack.c.bf16 %v3100, %v3099
        %v3110 = vpack.c.bf16 %v3102, %v3101
        %v3119 = vunpack.c.l.b16 %v3103
        %v3120 = vunpack.c.h.b16 %v3103
        %v3121 = vunpack.c.l.b16 %v3104
        %v3122 = vunpack.c.h.b16 %v3104
        %v3123 = vunpack.c.l.b16 %v3105
        %v3124 = vunpack.c.h.b16 %v3105
        %v3125 = vunpack.c.l.b16 %v3106
        %v3126 = vunpack.c.h.b16 %v3106
        %v3127 = vunpack.c.l.b16 %v3107
        %v3128 = vunpack.c.h.b16 %v3107
        %v3129 = vunpack.c.l.b16 %v3108
        %v3130 = vunpack.c.h.b16 %v3108
        %v3131 = vunpack.c.l.b16 %v3109
        %v3132 = vunpack.c.h.b16 %v3109
        %v3133 = vunpack.c.l.b16 %v3110
        %v3134 = vunpack.c.h.b16 %v3110
        %v3135 = vpack.c.b16 %v3119, %v3119
        %v3136 = vpack.c.b16 %v3120, %v3120
        %v3137 = vpack.c.b16 %v3121, %v3121
        %v3138 = vpack.c.b16 %v3122, %v3122
        %v3139 = vpack.c.b16 %v3123, %v3123
        %v3140 = vpack.c.b16 %v3124, %v3124
        %v3141 = vpack.c.b16 %v3125, %v3125
        %v3142 = vpack.c.b16 %v3126, %v3126
        %v3143 = vpack.c.b16 %v3127, %v3127
        %v3144 = vpack.c.b16 %v3128, %v3128
        %v3145 = vpack.c.b16 %v3129, %v3129
        %v3146 = vpack.c.b16 %v3130, %v3130
        %v3147 = vpack.c.b16 %v3131, %v3131
        %v3148 = vpack.c.b16 %v3132, %v3132
        %v3149 = vpack.c.b16 %v3133, %v3133
        %v3150 = vpack.c.b16 %v3134, %v3134
        %3167 = vst [vmem:[%s289] sm:$0xf] %v3135
        %3168 = vst [vmem:[%s289 + $0x4] sm:$0xf] %v3136
        %3169 = vst [vmem:[%s289 + $0x8] sm:$0xf] %v3137
        %3170 = vst [vmem:[%s289 + $0xc] sm:$0xf] %v3138
        %3171 = vst [vmem:[%s289 + $0x10] sm:$0xf] %v3139
        %3172 = vst [vmem:[%s289 + $0x14] sm:$0xf] %v3140
        %3173 = vst [vmem:[%s289 + $0x18] sm:$0xf] %v3141
        %3174 = vst [vmem:[%s289 + $0x1c] sm:$0xf] %v3142
        %3175 = vst [vmem:[%s289 + $0x20] sm:$0xf] %v3143
        %3176 = vst [vmem:[%s289 + $0x24] sm:$0xf] %v3144
        %3177 = vst [vmem:[%s289 + $0x28] sm:$0xf] %v3145
        %3178 = vst [vmem:[%s289 + $0x2c] sm:$0xf] %v3146
        %3179 = vst [vmem:[%s289 + $0x30] sm:$0xf] %v3147
        %3180 = vst [vmem:[%s289 + $0x34] sm:$0xf] %v3148
        %3181 = vst [vmem:[%s289 + $0x38] sm:$0xf] %v3149
        %3182 = vst [vmem:[%s289 + $0x3c] sm:$0xf] %v3150
        %s3183 = sand.u32 %s121, 1
        %s3184 = scalar_lea.sflag [#allocation3], %s3183
        %s3185 = sand.u32 %s121, 1
        %s3186 = smul.addr %s3185, 256
        %s3187 = scalar_lea.vmem [#allocation2], %s3186
        %s3188 = smul.u32 16, %s24
        %p3189 = scmp.lt.s32.totalorder %s23, 1
        %s3190 = scalar_select %p3189, %s23, 1
        %p3191 = scmp.lt.s32.totalorder %s3188, 15
        %s3192 = scalar_select %p3191, %s3188, 15
        %s3193 = smul.addr %s3190, 16
        %s3194 = sadd.s32 %s3192, %s3193
        %s3195 = smul.addr %s3194, 4
        %s3196 = scalar_lea.vmem %s4, %s3195
        // Predicated region
        $region33: #{encoder_forward.1} parent=31 // pred_check
          %p3197 = pneg %p131
        $region34: #{encoder_forward.1} parent=31 // pred_check_branch
          %3199 = sbr.rel (%p3197) target = $region36
        $region35: #{encoder_forward.1} parent=31 // pred_region
          %s3200 = smul.u32 16, %s24
          %s3202 = ssub.s32 4096, 4096
          %3203 = vsyncadd %s3184, %s3202
          %s3204 = smul.addr %s23, 64
          %s3205 = sadd.s32 %s3200, %s3204
          %s3206 = smul.addr %s3205, 64
          %s3207 = scalar_lea.hbm %s3, %s3206
          %s3208 = sshll.u32 %s3187, 4
          %s3209 = int_to_ptr.vmem [resolvable:$true] %s3208
          %3214 = dma.vmem_to_hbm [thread:$0]  %s3209, 4096, %s3207, %s3184, 64, 64, 4
        $region36: #{encoder_forward.1} parent=31 // pred_fallthru
          _
        // Predicated region
        $region37: #{encoder_forward.1} parent=31 // pred_check
          %p3215 = pneg %p159
        $region38: #{encoder_forward.1} parent=31 // pred_check_branch
          %3217 = sbr.rel (%p3215) target = $region40
        $region39: #{encoder_forward.1} parent=31 // pred_region
          %s3218 = smul.u32 16, %s24
        $region40: #{encoder_forward.1} parent=31 // pred_fallthru
          _
      $region32: #{encoder_forward.1} parent=5 // pred_fallthru
        _
      %p3219 = scmp.le.s32.totalorder 2, %s14
      // Predicated region
      $region41: #{encoder_forward.1} parent=5 // pred_check
        %p3220 = pneg %p3219
      $region42: #{encoder_forward.1} parent=5 // pred_check_branch
        %3222 = sbr.rel (%p3220) target = $region44
      $region43: #{encoder_forward.1} parent=5 // pred_region
        %s3223 = ssub.s32 %s14, 2
        // Predicated region
        $region45: #{encoder_forward.1} parent=43 // pred_check
          %p3224 = pneg %p137
        $region46: #{encoder_forward.1} parent=43 // pred_check_branch
          %3226 = sbr.rel (%p3224) target = $region48
        $region47: #{encoder_forward.1} parent=43 // pred_region
          %s3227 = sand.u32 %s122, 1
          %s3228 = scalar_lea.sflag [#allocation3], %s3227
          %s3229 = sand.u32 %s122, 1
          %s3230 = smul.addr %s3229, 256
          %s3231 = scalar_lea.vmem [#allocation2], %s3230
          %3232 = dma.done %s3228, 4096
        $region48: #{encoder_forward.1} parent=43 // pred_fallthru
          _
        // Predicated region
        $region49: #{encoder_forward.1} parent=43 // pred_check
          %p3233 = pneg %p165
        $region50: #{encoder_forward.1} parent=43 // pred_check_branch
          %3235 = sbr.rel (%p3233) target = $region52
        $region51: #{encoder_forward.1} parent=43 // pred_region
          %s3236 = smul.u32 16, %s26
          %p3237 = scmp.lt.s32.totalorder %s25, 1
          %s3238 = scalar_select %p3237, %s25, 1
          %p3239 = scmp.lt.s32.totalorder %s3236, 15
          %s3240 = scalar_select %p3239, %s3236, 15
          %s3241 = smul.addr %s3238, 16
          %s3242 = sadd.s32 %s3240, %s3241
          %s3243 = smul.addr %s3242, 4
          %s3244 = scalar_lea.vmem %s4, %s3243
        $region52: #{encoder_forward.1} parent=43 // pred_fallthru
          _
      $region44: #{encoder_forward.1} parent=5 // pred_fallthru
        _
    $region6: #{encoder_forward.1} parent=1 // loop_footer
      %s18 = sadd.s32 1, %s14
    $region7: #{encoder_forward.1} parent=1 // loop_footer_branch
      %13 = sbr.rel target = $region3
    $region8: #{encoder_forward.1} parent=1 // loop_exit
      _
    %3245 = vsyncpa [#allocation3], 1
    %s3246 = scalar_lea.sflag [#allocation3], 1
    %3247 = vsyncpa %s3246, 1

</llo_original>
